<compile_context>
chip_gen: v6e
topology: v6e:2x2x1
jax: 0.10.0
libtpu: 0.0.40
codegen_flags: <defaults>
</compile_context>

<pallas_src>
import jax
import jax.numpy as jnp
from jax.experimental import pallas as pl
from jax.experimental.pallas import tpu as pltpu


# ------------------------------ fused kernel --------------------------------

def _att2in2_step_kernel(it_ref, V2_ref, h_ref, c_ref, embed_hbm,
                         wa_ref, ba_ref,            # att_embed Linear  (F,H)/(1,H)
                         wc_ref, bc_ref,            # ctx2att           (H,H)/(1,H)
                         wh2a_ref, bh2a_ref,        # attention.h2att   (H,H)/(1,H)
                         walpha_ref, balpha_ref,    # attention.alpha_net (1,H)/SMEM(1,)
                         wi_ref, wh_ref, wa2c_ref,  # i2h (H,5H), h2h (H,5H), a2c (H,2H)
                         bih2h_ref,                 # folded biases (1,5H)
                         nh_ref, nc_ref,            # outputs (B,H)
                         xt_buf, emb_sem):          # scratch: (B,H) f32, DMA sems (B,)
    B, H = h_ref.shape
    BR = V2_ref.shape[0]
    R = BR // B

    # ---- (1) kick off the B embedding-row gathers (HBM -> VMEM scratch) early,
    #          so the DMAs overlap the attention matmuls below --------------------
    emb_copies = []
    for b in range(B):
        cp = pltpu.make_async_copy(
            embed_hbm.at[pl.ds(it_ref[b], 1), :],
            xt_buf.at[pl.ds(b, 1), :],
            emb_sem.at[b])
        cp.start()
        emb_copies.append(cp)

    h = h_ref[...]                                   # (B, H) f32
    c = c_ref[...]                                   # (B, H) f32
    h_bf = h.astype(jnp.bfloat16)

    # ---- (2) batched attention front-end: 3 large MXU dots (no per-b matmuls) ---
    att_all = jnp.maximum(
        jnp.dot(V2_ref[...], wa_ref[...], preferred_element_type=jnp.float32)
        + ba_ref[...], 0.0)                          # (B*R, H)  att_embed, f32
    att_bf = att_all.astype(jnp.bfloat16)
    p_all = (jnp.dot(att_bf, wc_ref[...], preferred_element_type=jnp.float32)
             + bc_ref[...])                          # (B*R, H)  ctx2att
    att_h = (jnp.dot(h_bf, wh2a_ref[...], preferred_element_type=jnp.float32)
             + bh2a_ref[...])                        # (B, H)    h2att (once, batched)

    # ---- (3) per-batch softmax attention pool (VPU/EUP/XLU only, no MXU) --------
    walpha = walpha_ref[...]                         # (1, H) f32
    balpha = balpha_ref[0]                           # scalar f32 (SMEM)
    att_res_rows = []
    for b in range(B):
        p_b = p_all[b * R:(b + 1) * R, :]            # (R, H)
        a_b = att_all[b * R:(b + 1) * R, :]          # (R, H)
        dot_b = jnp.tanh(p_b + att_h[b:b + 1, :])    # (R, H)
        # alpha_net as broadcast-mul + lane reduce (no N=1 matmul)
        s = jnp.sum(dot_b * walpha, axis=1, keepdims=True) + balpha   # (R, 1)
        m = jnp.max(s, axis=0, keepdims=True)
        e = jnp.exp(s - m)
        den = jnp.sum(e, axis=0, keepdims=True)
        att_res_rows.append(jnp.sum(e * a_b, axis=0, keepdims=True) / den)  # (1, H)
    att_res = jnp.concatenate(att_res_rows, axis=0)  # (B, H) f32

    # ---- (4) finish the embedding gather: xt = ReLU(Embed[it]) ------------------
    for cp in emb_copies:
        cp.wait()
    xt = jnp.maximum(xt_buf[...], 0.0)               # (B, H) f32
    xt_bf = xt.astype(jnp.bfloat16)

    # ---- (5) recurrent pre-activations: i2h(xt) + h2h(h), a2c(att_res) ----------
    sums = (jnp.dot(xt_bf, wi_ref[...], preferred_element_type=jnp.float32)
            + jnp.dot(h_bf, wh_ref[...], preferred_element_type=jnp.float32)
            + bih2h_ref[...])                        # (B, 5H) f32

    sig = jax.nn.sigmoid(sums[:, 0:3 * H])
    in_gate = sig[:, 0:H]
    forget_gate = sig[:, H:2 * H]
    out_gate = sig[:, 2 * H:3 * H]

    pre = sums[:, 3 * H:5 * H] + jnp.dot(
        att_res.astype(jnp.bfloat16), wa2c_ref[...],
        preferred_element_type=jnp.float32)          # (B, 2H)  a2c (bias pre-folded)
    in_transform = jnp.maximum(pre[:, 0:H], pre[:, H:2 * H])

    next_c = forget_gate * c + in_gate * in_transform
    next_h = out_gate * jnp.tanh(next_c)
    nh_ref[...] = next_h
    nc_ref[...] = next_c


# -------------------------- jitted per-step driver --------------------------

def _att2in2_step(it, V, h, c, embed_w, wa_t, ba, wc_t, bc,
                  wh2a_t, bh2a, walpha, balpha, wi_t, wh_t, wa2c_t, b_ih2h):
    B, R, F = V.shape
    H = h.shape[1]
    V2 = V.reshape(B * R, F).astype(jnp.bfloat16)    # XLA-side flatten + downcast

    vmem = pl.BlockSpec(memory_space=pltpu.MemorySpace.VMEM)
    smem = pl.BlockSpec(memory_space=pltpu.MemorySpace.SMEM)
    hbm = pl.BlockSpec(memory_space=pl.ANY)          # embedding table stays in HBM

    def nbytes(x):
        return int(x.size) * x.dtype.itemsize

    vmem_est = sum(nbytes(x) for x in (V2, h, c, wa_t, ba, wc_t, bc, wh2a_t,
                                       bh2a, walpha, wi_t, wh_t, wa2c_t, b_ih2h))
    vmem_est += 3 * B * H * 4                        # outputs + xt scratch
    vmem_est += 4 * B * R * H * 4                    # att_all / p_all style temporaries
    # Explicit scoped-VMEM budget: above the 16 MiB v5e default, under v7x's 64 MiB.
    vmem_limit = int(max(32 << 20, min(2 * vmem_est + (8 << 20), 56 << 20)))

    next_h, next_c = pl.pallas_call(
        _att2in2_step_kernel,
        out_shape=(jax.ShapeDtypeStruct((B, H), jnp.float32),
                   jax.ShapeDtypeStruct((B, H), jnp.float32)),
        in_specs=[smem,                      # it (token ids)
                  vmem, vmem, vmem,          # V2, h, c
                  hbm,                       # embedding table (HBM resident)
                  vmem, vmem,                # wa_t, ba
                  vmem, vmem,                # wc_t, bc
                  vmem, vmem,                # wh2a_t, bh2a
                  vmem, smem,                # walpha, balpha (scalar)
                  vmem, vmem, vmem, vmem],   # wi_t, wh_t, wa2c_t, b_ih2h
        out_specs=(vmem, vmem),
        scratch_shapes=[pltpu.VMEM((B, H), jnp.float32),
                        pltpu.SemaphoreType.DMA((B,))],
        input_output_aliases={2: 0, 3: 1},   # h -> next_h, c -> next_c (in place)
        compiler_params=pltpu.CompilerParams(vmem_limit_bytes=vmem_limit),
    )(it, V2, h, c, embed_w, wa_t, ba, wc_t, bc, wh2a_t, bh2a,
      walpha, balpha, wi_t, wh_t, wa2c_t, b_ih2h)
    return next_h, next_c


_att2in2_step_jit = jax.jit(_att2in2_step, donate_argnums=(2, 3))


# --------------------------------- wrapper ----------------------------------

class Att2in2CorePallas:
    """JAX/Pallas re-implementation of Att2in2Core.forward (eval mode)."""

    def __init__(self, img_feat_size, hidden_size, vocab_size, key):
        self.img_feat_size = img_feat_size
        self.hidden_size = hidden_size
        self.vocab_size = vocab_size
        H, F = hidden_size, img_feat_size

        ks = jax.random.split(key, 15)

        def lin(kw, kb, out_f, in_f):
            bound = 1.0 / jnp.sqrt(in_f)
            w = jax.random.uniform(kw, (out_f, in_f), jnp.float32, -bound, bound)
            b = jax.random.uniform(kb, (out_f,), jnp.float32, -bound, bound)
            return w, b

        # PyTorch-shaped parameters
        w_att, b_att = lin(ks[0], ks[1], H, F)        # att_embed.Linear
        w_ctx, b_ctx = lin(ks[2], ks[3], H, H)        # ctx2att
        w_h2a, b_h2a = lin(ks[4], ks[5], H, H)        # attention.h2att
        w_alp, b_alp = lin(ks[6], ks[7], 1, H)        # attention.alpha_net
        w_a2c, b_a2c = lin(ks[8], ks[9], 2 * H, H)    # a2c
        w_i2h, b_i2h = lin(ks[10], ks[11], 5 * H, H)  # i2h
        w_h2h, b_h2h = lin(ks[12], ks[13], 5 * H, H)  # h2h
        # nn.Embedding table: kept f32 and HBM-resident; only B rows are DMA'd/step.
        self.embed_w = jax.random.uniform(
            ks[14], (vocab_size + 1, H), jnp.float32, -0.1, 0.1)

        bf = jnp.bfloat16
        # Pre-transposed (in, out) + bf16 MXU weights; biases stay f32.
        self.wa_t = w_att.T.astype(bf)                # (F, H)
        self.ba = b_att[None, :]                      # (1, H)
        self.wc_t = w_ctx.T.astype(bf)                # (H, H)
        self.bc = b_ctx[None, :]                      # (1, H)
        self.wh2a_t = w_h2a.T.astype(bf)              # (H, H)
        self.bh2a = b_h2a[None, :]                    # (1, H)
        self.walpha = w_alp                           # (1, H) f32 (elementwise use)
        self.balpha = b_alp                           # (1,)   f32 -> SMEM scalar
        self.wi_t = w_i2h.T.astype(bf)                # (H, 5H)
        self.wh_t = w_h2h.T.astype(bf)                # (H, 5H)
        self.wa2c_t = w_a2c.T.astype(bf)              # (H, 2H)  (no zero block shipped)
        b_big = b_i2h + b_h2h
        b_big = b_big.at[3 * H:5 * H].add(b_a2c)      # fold a2c bias into 3H:5H cols
        self.b_ih2h = b_big[None, :]                  # (1, 5H) f32

    def __call__(self, time, V, v_g, captions, state, hiddens, val=False):
        # `time` is a static Python int (dispatch, as in the PyTorch module).
        B = V.shape[0]
        H = self.hidden_size

        if val:
            it = jnp.squeeze(captions, axis=1)
        else:
            it = captions[:, time]
        # nn.Embedding would error on OOB ids; clamping keeps the in-kernel
        # HBM row DMA in bounds.
        it = jnp.clip(it, 0, self.vocab_size).astype(jnp.int32)

        if time == 0:
            h = jnp.zeros((B, H), jnp.float32)
            c = jnp.zeros((B, H), jnp.float32)
        else:
            h = state[0][-1]
            c = state[1][-1]

        next_h, next_c = _att2in2_step_jit(
            it, V, h, c, self.embed_w,
            self.wa_t, self.ba, self.wc_t, self.bc,
            self.wh2a_t, self.bh2a, self.walpha, self.balpha,
            self.wi_t, self.wh_t, self.wa2c_t, self.b_ih2h)

        output = next_h[:, None, :]                        # (B, 1, H)  dropout==id
        new_state = (next_h[None, :, :], next_c[None, :, :])
        return output, new_state


if __name__ == "__main__":
    B = 2        # batch
    F = 64       # img_feat_size
    H = 32       # hidden_size
    VOCAB = 20   # vocab size
    SEQ = 8      # caption length
    R = 49       # 7x7 region features (required by the reference view(B,7,7,H))

    key = jax.random.PRNGKey(0)
    k_param, k_v, k_vg, k_cap = jax.random.split(key, 4)

    model = Att2in2CorePallas(F, H, VOCAB, k_param)

    V = jax.random.normal(k_v, (B, R, F), jnp.float32)
    v_g = jax.random.normal(k_vg, (B, F), jnp.float32)   # feeds only dead fc_embed
    captions = jax.random.randint(k_cap, (B, SEQ), 0, VOCAB + 1, dtype=jnp.int32)
    hiddens = None                                        # unused by the forward

    # time == 0: the reference zeroes the (h, c) state internally.
    out0, st0 = model(0, V, v_g, captions, None, hiddens)
    # time > 0: carry the returned state tuple.
    out3, st3 = model(3, V, v_g, captions, st0, hiddens)
    # val path: captions of shape (B, 1), squeezed inside.
    out_val, st_val = model(5, V, v_g, captions[:, 2:3], st3, hiddens, val=True)

    jax.block_until_ready((out0, st0, out3, st3, out_val, st_val))
    assert out0.shape == (B, 1, H)
    assert st0[0].shape == (1, B, H) and st0[1].shape == (1, B, H)
    assert out3.shape == (B, 1, H) and out_val.shape == (B, 1, H)
    print("KERNEL_OK")
</pallas_src>

<mosaic_0001>
module attributes {stable_mosaic.version = 11 : i64} {
  func.func @_att2in2_step_kernel(%arg0: memref<2xi32, #tpu.memory_space<smem>>, %arg1: memref<98x64xbf16, #tpu.memory_space<vmem>>, %arg2: memref<2x32xf32, #tpu.memory_space<vmem>>, %arg3: memref<2x32xf32, #tpu.memory_space<vmem>>, %arg4: memref<21x32xf32, #tpu.memory_space<any>>, %arg5: memref<64x32xbf16, #tpu.memory_space<vmem>>, %arg6: memref<1x32xf32, #tpu.memory_space<vmem>>, %arg7: memref<32x32xbf16, #tpu.memory_space<vmem>>, %arg8: memref<1x32xf32, #tpu.memory_space<vmem>>, %arg9: memref<32x32xbf16, #tpu.memory_space<vmem>>, %arg10: memref<1x32xf32, #tpu.memory_space<vmem>>, %arg11: memref<1x32xf32, #tpu.memory_space<vmem>>, %arg12: memref<1xf32, #tpu.memory_space<smem>>, %arg13: memref<32x160xbf16, #tpu.memory_space<vmem>>, %arg14: memref<32x160xbf16, #tpu.memory_space<vmem>>, %arg15: memref<32x64xbf16, #tpu.memory_space<vmem>>, %arg16: memref<1x160xf32, #tpu.memory_space<vmem>>, %arg17: memref<2x32xf32, #tpu.memory_space<vmem>>, %arg18: memref<2x32xf32, #tpu.memory_space<vmem>>, %arg19: memref<2x32xf32, #tpu.memory_space<vmem>>, %arg20: memref<2x!tpu.dma_semaphore, #tpu.memory_space<semaphore_mem>>) attributes {dimension_semantics = [], scalar_prefetch = 0 : i64, scratch_operands = 2 : i64, tpu.core_type = #tpu.core_type<tc>} {
    %c0 = arith.constant 0 : index
    %0 = memref.load %arg0[%c0] : memref<2xi32, #tpu.memory_space<smem>>
    %c0_i32 = arith.constant 0 : i32
    %c0_i32_0 = arith.constant 0 : i32
    %1 = tpu.memref_slice %arg4[%0, %c0_i32_0] : memref<21x32xf32, #tpu.memory_space<any>> -> memref<1x32xf32, #tpu.memory_space<any>>
    %c0_i32_1 = arith.constant 0 : i32
    %c0_i32_2 = arith.constant 0 : i32
    %2 = tpu.memref_slice %arg19[%c0_i32_1, %c0_i32_2] : memref<2x32xf32, #tpu.memory_space<vmem>> -> memref<1x32xf32, #tpu.memory_space<vmem>>
    %3 = tpu.memref_slice %arg20[%c0_i32] : memref<2x!tpu.dma_semaphore, #tpu.memory_space<semaphore_mem>> -> memref<1x!tpu.dma_semaphore, #tpu.memory_space<semaphore_mem>>
    %4 = tpu.memref_squeeze %3 : memref<1x!tpu.dma_semaphore, #tpu.memory_space<semaphore_mem>> -> memref<!tpu.dma_semaphore, #tpu.memory_space<semaphore_mem>>
    tpu.enqueue_dma source(%1 : memref<1x32xf32, #tpu.memory_space<any>>) target(%2 : memref<1x32xf32, #tpu.memory_space<vmem>>) target_semaphore(%4 : memref<!tpu.dma_semaphore, #tpu.memory_space<semaphore_mem>>)
    %c1 = arith.constant 1 : index
    %5 = memref.load %arg0[%c1] : memref<2xi32, #tpu.memory_space<smem>>
    %c1_i32 = arith.constant 1 : i32
    %c0_i32_3 = arith.constant 0 : i32
    %6 = tpu.memref_slice %arg4[%5, %c0_i32_3] : memref<21x32xf32, #tpu.memory_space<any>> -> memref<1x32xf32, #tpu.memory_space<any>>
    %c1_i32_4 = arith.constant 1 : i32
    %c0_i32_5 = arith.constant 0 : i32
    %7 = tpu.memref_slice %arg19[%c1_i32_4, %c0_i32_5] : memref<2x32xf32, #tpu.memory_space<vmem>> -> memref<1x32xf32, #tpu.memory_space<vmem>>
    %8 = tpu.memref_slice %arg20[%c1_i32] : memref<2x!tpu.dma_semaphore, #tpu.memory_space<semaphore_mem>> -> memref<1x!tpu.dma_semaphore, #tpu.memory_space<semaphore_mem>>
    %9 = tpu.memref_squeeze %8 : memref<1x!tpu.dma_semaphore, #tpu.memory_space<semaphore_mem>> -> memref<!tpu.dma_semaphore, #tpu.memory_space<semaphore_mem>>
    tpu.enqueue_dma source(%6 : memref<1x32xf32, #tpu.memory_space<any>>) target(%7 : memref<1x32xf32, #tpu.memory_space<vmem>>) target_semaphore(%9 : memref<!tpu.dma_semaphore, #tpu.memory_space<semaphore_mem>>)
    %c0_6 = arith.constant 0 : index
    %c0_7 = arith.constant 0 : index
    %10 = vector.load %arg2[%c0_6, %c0_7] : memref<2x32xf32, #tpu.memory_space<vmem>>, vector<2x32xf32>
    %c0_8 = arith.constant 0 : index
    %c0_9 = arith.constant 0 : index
    %11 = vector.load %arg3[%c0_8, %c0_9] : memref<2x32xf32, #tpu.memory_space<vmem>>, vector<2x32xf32>
    %12 = arith.truncf %10 : vector<2x32xf32> to vector<2x32xbf16>
    %c0_10 = arith.constant 0 : index
    %c0_11 = arith.constant 0 : index
    %13 = vector.load %arg1[%c0_10, %c0_11] : memref<98x64xbf16, #tpu.memory_space<vmem>>, vector<98x64xbf16>
    %c0_12 = arith.constant 0 : index
    %c0_13 = arith.constant 0 : index
    %14 = vector.load %arg5[%c0_12, %c0_13] : memref<64x32xbf16, #tpu.memory_space<vmem>>, vector<64x32xbf16>
    %cst = arith.constant dense<0.000000e+00> : vector<98x32xf32>
    %15 = tpu.matmul %13, %14, %cst {dimension_numbers = #tpu.dot_dimension_numbers<[1], [0], [0], [1], [0, 0, 1, 1], [], []>} : vector<98x64xbf16>, vector<64x32xbf16>, vector<98x32xf32> -> vector<98x32xf32>
    %c0_14 = arith.constant 0 : index
    %c0_15 = arith.constant 0 : index
    %16 = vector.load %arg6[%c0_14, %c0_15] : memref<1x32xf32, #tpu.memory_space<vmem>>, vector<1x32xf32>
    %17 = vector.broadcast %16 : vector<1x32xf32> to vector<98x32xf32>
    %18 = arith.addf %15, %17 : vector<98x32xf32>
    %cst_16 = arith.constant 0.000000e+00 : f32
    %19 = vector.broadcast %cst_16 : f32 to vector<98x32xf32>
    %20 = arith.maximumf %18, %19 : vector<98x32xf32>
    %21 = arith.truncf %20 : vector<98x32xf32> to vector<98x32xbf16>
    %c0_17 = arith.constant 0 : index
    %c0_18 = arith.constant 0 : index
    %22 = vector.load %arg7[%c0_17, %c0_18] : memref<32x32xbf16, #tpu.memory_space<vmem>>, vector<32x32xbf16>
    %cst_19 = arith.constant dense<0.000000e+00> : vector<98x32xf32>
    %23 = tpu.matmul %21, %22, %cst_19 {dimension_numbers = #tpu.dot_dimension_numbers<[1], [0], [0], [1], [0, 0, 1, 1], [], []>} : vector<98x32xbf16>, vector<32x32xbf16>, vector<98x32xf32> -> vector<98x32xf32>
    %c0_20 = arith.constant 0 : index
    %c0_21 = arith.constant 0 : index
    %24 = vector.load %arg8[%c0_20, %c0_21] : memref<1x32xf32, #tpu.memory_space<vmem>>, vector<1x32xf32>
    %25 = vector.broadcast %24 : vector<1x32xf32> to vector<98x32xf32>
    %26 = arith.addf %23, %25 : vector<98x32xf32>
    %c0_22 = arith.constant 0 : index
    %c0_23 = arith.constant 0 : index
    %27 = vector.load %arg9[%c0_22, %c0_23] : memref<32x32xbf16, #tpu.memory_space<vmem>>, vector<32x32xbf16>
    %cst_24 = arith.constant dense<0.000000e+00> : vector<2x32xf32>
    %28 = tpu.matmul %12, %27, %cst_24 {dimension_numbers = #tpu.dot_dimension_numbers<[1], [0], [0], [1], [0, 0, 1, 1], [], []>} : vector<2x32xbf16>, vector<32x32xbf16>, vector<2x32xf32> -> vector<2x32xf32>
    %c0_25 = arith.constant 0 : index
    %c0_26 = arith.constant 0 : index
    %29 = vector.load %arg10[%c0_25, %c0_26] : memref<1x32xf32, #tpu.memory_space<vmem>>, vector<1x32xf32>
    %30 = vector.broadcast %29 : vector<1x32xf32> to vector<2x32xf32>
    %31 = arith.addf %28, %30 : vector<2x32xf32>
    %c0_27 = arith.constant 0 : index
    %c0_28 = arith.constant 0 : index
    %32 = vector.load %arg11[%c0_27, %c0_28] : memref<1x32xf32, #tpu.memory_space<vmem>>, vector<1x32xf32>
    %c0_29 = arith.constant 0 : index
    %33 = memref.load %arg12[%c0_29] : memref<1xf32, #tpu.memory_space<smem>>
    %34 = vector.extract_strided_slice %26 {offsets = [0, 0], sizes = [49, 32], strides = [1, 1]} : vector<98x32xf32> to vector<49x32xf32>
    %35 = vector.extract_strided_slice %20 {offsets = [0, 0], sizes = [49, 32], strides = [1, 1]} : vector<98x32xf32> to vector<49x32xf32>
    %36 = vector.extract_strided_slice %31 {offsets = [0, 0], sizes = [1, 32], strides = [1, 1]} : vector<2x32xf32> to vector<1x32xf32>
    %37 = vector.broadcast %36 : vector<1x32xf32> to vector<49x32xf32>
    %38 = arith.addf %34, %37 : vector<49x32xf32>
    %39 = math.tanh %38 : vector<49x32xf32>
    %40 = vector.broadcast %32 : vector<1x32xf32> to vector<49x32xf32>
    %41 = arith.mulf %39, %40 : vector<49x32xf32>
    %cst_30 = arith.constant dense<0.000000e+00> : vector<49xf32>
    %42 = vector.multi_reduction <add>, %41, %cst_30 [1] : vector<49x32xf32> to vector<49xf32>
    %43 = vector.shape_cast %42 : vector<49xf32> to vector<49x1xf32>
    %44 = vector.broadcast %33 : f32 to vector<49x1xf32>
    %45 = arith.addf %43, %44 : vector<49x1xf32>
    %cst_31 = arith.constant dense<0xFF800000> : vector<1xf32>
    %46 = vector.multi_reduction <maximumf>, %45, %cst_31 [0] : vector<49x1xf32> to vector<1xf32>
    %47 = vector.shape_cast %46 : vector<1xf32> to vector<1x1xf32>
    %48 = vector.broadcast %47 : vector<1x1xf32> to vector<49x1xf32>
    %49 = arith.subf %45, %48 : vector<49x1xf32>
    %50 = math.exp %49 : vector<49x1xf32>
    %cst_32 = arith.constant dense<0.000000e+00> : vector<1xf32>
    %51 = vector.multi_reduction <add>, %50, %cst_32 [0] : vector<49x1xf32> to vector<1xf32>
    %52 = vector.shape_cast %51 : vector<1xf32> to vector<1x1xf32>
    %53 = vector.broadcast %50 : vector<49x1xf32> to vector<49x32xf32>
    %54 = arith.mulf %53, %35 : vector<49x32xf32>
    %cst_33 = arith.constant dense<0.000000e+00> : vector<32xf32>
    %55 = vector.multi_reduction <add>, %54, %cst_33 [0] : vector<49x32xf32> to vector<32xf32>
    %56 = vector.shape_cast %55 : vector<32xf32> to vector<1x32xf32>
    %57 = vector.broadcast %52 : vector<1x1xf32> to vector<1x32xf32>
    %58 = arith.divf %56, %57 : vector<1x32xf32>
    %59 = vector.extract_strided_slice %26 {offsets = [49, 0], sizes = [49, 32], strides = [1, 1]} : vector<98x32xf32> to vector<49x32xf32>
    %60 = vector.extract_strided_slice %20 {offsets = [49, 0], sizes = [49, 32], strides = [1, 1]} : vector<98x32xf32> to vector<49x32xf32>
    %61 = vector.extract_strided_slice %31 {offsets = [1, 0], sizes = [1, 32], strides = [1, 1]} : vector<2x32xf32> to vector<1x32xf32>
    %62 = vector.broadcast %61 : vector<1x32xf32> to vector<49x32xf32>
    %63 = arith.addf %59, %62 : vector<49x32xf32>
    %64 = math.tanh %63 : vector<49x32xf32>
    %65 = vector.broadcast %32 : vector<1x32xf32> to vector<49x32xf32>
    %66 = arith.mulf %64, %65 : vector<49x32xf32>
    %cst_34 = arith.constant dense<0.000000e+00> : vector<49xf32>
    %67 = vector.multi_reduction <add>, %66, %cst_34 [1] : vector<49x32xf32> to vector<49xf32>
    %68 = vector.shape_cast %67 : vector<49xf32> to vector<49x1xf32>
    %69 = vector.broadcast %33 : f32 to vector<49x1xf32>
    %70 = arith.addf %68, %69 : vector<49x1xf32>
    %cst_35 = arith.constant dense<0xFF800000> : vector<1xf32>
    %71 = vector.multi_reduction <maximumf>, %70, %cst_35 [0] : vector<49x1xf32> to vector<1xf32>
    %72 = vector.shape_cast %71 : vector<1xf32> to vector<1x1xf32>
    %73 = vector.broadcast %72 : vector<1x1xf32> to vector<49x1xf32>
    %74 = arith.subf %70, %73 : vector<49x1xf32>
    %75 = math.exp %74 : vector<49x1xf32>
    %cst_36 = arith.constant dense<0.000000e+00> : vector<1xf32>
    %76 = vector.multi_reduction <add>, %75, %cst_36 [0] : vector<49x1xf32> to vector<1xf32>
    %77 = vector.shape_cast %76 : vector<1xf32> to vector<1x1xf32>
    %78 = vector.broadcast %75 : vector<49x1xf32> to vector<49x32xf32>
    %79 = arith.mulf %78, %60 : vector<49x32xf32>
    %cst_37 = arith.constant dense<0.000000e+00> : vector<32xf32>
    %80 = vector.multi_reduction <add>, %79, %cst_37 [0] : vector<49x32xf32> to vector<32xf32>
    %81 = vector.shape_cast %80 : vector<32xf32> to vector<1x32xf32>
    %82 = vector.broadcast %77 : vector<1x1xf32> to vector<1x32xf32>
    %83 = arith.divf %81, %82 : vector<1x32xf32>
    %84 = tpu.concatenate %58, %83 in 0 : vector<1x32xf32>, vector<1x32xf32> -> vector<2x32xf32>
    %c0_i32_38 = arith.constant 0 : i32
    %c0_i32_39 = arith.constant 0 : i32
    %85 = tpu.memref_slice %arg4[%0, %c0_i32_39] : memref<21x32xf32, #tpu.memory_space<any>> -> memref<1x32xf32, #tpu.memory_space<any>>
    %c0_i32_40 = arith.constant 0 : i32
    %c0_i32_41 = arith.constant 0 : i32
    %86 = tpu.memref_slice %arg19[%c0_i32_40, %c0_i32_41] : memref<2x32xf32, #tpu.memory_space<vmem>> -> memref<1x32xf32, #tpu.memory_space<vmem>>
    %87 = tpu.memref_slice %arg20[%c0_i32_38] : memref<2x!tpu.dma_semaphore, #tpu.memory_space<semaphore_mem>> -> memref<1x!tpu.dma_semaphore, #tpu.memory_space<semaphore_mem>>
    %88 = tpu.memref_squeeze %87 : memref<1x!tpu.dma_semaphore, #tpu.memory_space<semaphore_mem>> -> memref<!tpu.dma_semaphore, #tpu.memory_space<semaphore_mem>>
    tpu.wait_dma2 semaphore(%88 : memref<!tpu.dma_semaphore, #tpu.memory_space<semaphore_mem>>) src(%85 : memref<1x32xf32, #tpu.memory_space<any>>) dst(%86 : memref<1x32xf32, #tpu.memory_space<vmem>>)
    %c1_i32_42 = arith.constant 1 : i32
    %c0_i32_43 = arith.constant 0 : i32
    %89 = tpu.memref_slice %arg4[%5, %c0_i32_43] : memref<21x32xf32, #tpu.memory_space<any>> -> memref<1x32xf32, #tpu.memory_space<any>>
    %c1_i32_44 = arith.constant 1 : i32
    %c0_i32_45 = arith.constant 0 : i32
    %90 = tpu.memref_slice %arg19[%c1_i32_44, %c0_i32_45] : memref<2x32xf32, #tpu.memory_space<vmem>> -> memref<1x32xf32, #tpu.memory_space<vmem>>
    %91 = tpu.memref_slice %arg20[%c1_i32_42] : memref<2x!tpu.dma_semaphore, #tpu.memory_space<semaphore_mem>> -> memref<1x!tpu.dma_semaphore, #tpu.memory_space<semaphore_mem>>
    %92 = tpu.memref_squeeze %91 : memref<1x!tpu.dma_semaphore, #tpu.memory_space<semaphore_mem>> -> memref<!tpu.dma_semaphore, #tpu.memory_space<semaphore_mem>>
    tpu.wait_dma2 semaphore(%92 : memref<!tpu.dma_semaphore, #tpu.memory_space<semaphore_mem>>) src(%89 : memref<1x32xf32, #tpu.memory_space<any>>) dst(%90 : memref<1x32xf32, #tpu.memory_space<vmem>>)
    %c0_46 = arith.constant 0 : index
    %c0_47 = arith.constant 0 : index
    %93 = vector.load %arg19[%c0_46, %c0_47] : memref<2x32xf32, #tpu.memory_space<vmem>>, vector<2x32xf32>
    %cst_48 = arith.constant 0.000000e+00 : f32
    %94 = vector.broadcast %cst_48 : f32 to vector<2x32xf32>
    %95 = arith.maximumf %93, %94 : vector<2x32xf32>
    %96 = arith.truncf %95 : vector<2x32xf32> to vector<2x32xbf16>
    %c0_49 = arith.constant 0 : index
    %c0_50 = arith.constant 0 : index
    %97 = vector.load %arg13[%c0_49, %c0_50] : memref<32x160xbf16, #tpu.memory_space<vmem>>, vector<32x160xbf16>
    %cst_51 = arith.constant dense<0.000000e+00> : vector<2x160xf32>
    %98 = tpu.matmul %96, %97, %cst_51 {dimension_numbers = #tpu.dot_dimension_numbers<[1], [0], [0], [1], [0, 0, 1, 1], [], []>} : vector<2x32xbf16>, vector<32x160xbf16>, vector<2x160xf32> -> vector<2x160xf32>
    %c0_52 = arith.constant 0 : index
    %c0_53 = arith.constant 0 : index
    %99 = vector.load %arg14[%c0_52, %c0_53] : memref<32x160xbf16, #tpu.memory_space<vmem>>, vector<32x160xbf16>
    %cst_54 = arith.constant dense<0.000000e+00> : vector<2x160xf32>
    %100 = tpu.matmul %12, %99, %cst_54 {dimension_numbers = #tpu.dot_dimension_numbers<[1], [0], [0], [1], [0, 0, 1, 1], [], []>} : vector<2x32xbf16>, vector<32x160xbf16>, vector<2x160xf32> -> vector<2x160xf32>
    %101 = arith.addf %98, %100 : vector<2x160xf32>
    %c0_55 = arith.constant 0 : index
    %c0_56 = arith.constant 0 : index
    %102 = vector.load %arg16[%c0_55, %c0_56] : memref<1x160xf32, #tpu.memory_space<vmem>>, vector<1x160xf32>
    %103 = vector.broadcast %102 : vector<1x160xf32> to vector<2x160xf32>
    %104 = arith.addf %101, %103 : vector<2x160xf32>
    %105 = vector.extract_strided_slice %104 {offsets = [0, 0], sizes = [2, 96], strides = [1, 1]} : vector<2x160xf32> to vector<2x96xf32>
    %106 = arith.negf %105 : vector<2x96xf32>
    %107 = math.exp %106 : vector<2x96xf32>
    %cst_57 = arith.constant 1.000000e+00 : f32
    %108 = vector.broadcast %cst_57 : f32 to vector<2x96xf32>
    %109 = arith.addf %108, %107 : vector<2x96xf32>
    %110 = arith.divf %108, %109 : vector<2x96xf32>
    %111 = vector.extract_strided_slice %110 {offsets = [0, 0], sizes = [2, 32], strides = [1, 1]} : vector<2x96xf32> to vector<2x32xf32>
    %112 = vector.extract_strided_slice %110 {offsets = [0, 32], sizes = [2, 32], strides = [1, 1]} : vector<2x96xf32> to vector<2x32xf32>
    %113 = vector.extract_strided_slice %110 {offsets = [0, 64], sizes = [2, 32], strides = [1, 1]} : vector<2x96xf32> to vector<2x32xf32>
    %114 = vector.extract_strided_slice %104 {offsets = [0, 96], sizes = [2, 64], strides = [1, 1]} : vector<2x160xf32> to vector<2x64xf32>
    %115 = arith.truncf %84 : vector<2x32xf32> to vector<2x32xbf16>
    %c0_58 = arith.constant 0 : index
    %c0_59 = arith.constant 0 : index
    %116 = vector.load %arg15[%c0_58, %c0_59] : memref<32x64xbf16, #tpu.memory_space<vmem>>, vector<32x64xbf16>
    %cst_60 = arith.constant dense<0.000000e+00> : vector<2x64xf32>
    %117 = tpu.matmul %115, %116, %cst_60 {dimension_numbers = #tpu.dot_dimension_numbers<[1], [0], [0], [1], [0, 0, 1, 1], [], []>} : vector<2x32xbf16>, vector<32x64xbf16>, vector<2x64xf32> -> vector<2x64xf32>
    %118 = arith.addf %114, %117 : vector<2x64xf32>
    %119 = vector.extract_strided_slice %118 {offsets = [0, 0], sizes = [2, 32], strides = [1, 1]} : vector<2x64xf32> to vector<2x32xf32>
    %120 = vector.extract_strided_slice %118 {offsets = [0, 32], sizes = [2, 32], strides = [1, 1]} : vector<2x64xf32> to vector<2x32xf32>
    %121 = arith.maximumf %119, %120 : vector<2x32xf32>
    %122 = arith.mulf %112, %11 : vector<2x32xf32>
    %123 = arith.mulf %111, %121 : vector<2x32xf32>
    %124 = arith.addf %122, %123 : vector<2x32xf32>
    %125 = math.tanh %124 : vector<2x32xf32>
    %126 = arith.mulf %113, %125 : vector<2x32xf32>
    %c0_61 = arith.constant 0 : index
    %c0_62 = arith.constant 0 : index
    %127 = vector.load %arg17[%c0_61, %c0_62] : memref<2x32xf32, #tpu.memory_space<vmem>>, vector<2x32xf32>
    tpu.vector_store %arg17[%c0_61, %c0_62], %126 {strides = array<i32>} : memref<2x32xf32, #tpu.memory_space<vmem>>, vector<2x32xf32>,
    %c0_63 = arith.constant 0 : index
    %c0_64 = arith.constant 0 : index
    %128 = vector.load %arg18[%c0_63, %c0_64] : memref<2x32xf32, #tpu.memory_space<vmem>>, vector<2x32xf32>
    tpu.vector_store %arg18[%c0_63, %c0_64], %124 {strides = array<i32>} : memref<2x32xf32, #tpu.memory_space<vmem>>, vector<2x32xf32>,
    return
  }
}

</mosaic_0001>

<llo_original>
// kernel: _att2in2_step.1
$region0: #{_att2in2_step.1}
  #allocation0 [shape = 'u32[]', space=smem, size = 0x4, offset = 0x4, fixed_abs, tag = 'smem constant byte address 0x4 - core index']
  #allocation1 [shape = 'u32[144,128]{1,0:T(1,128)}', space=vmem, size = 0x12000, scoped, tag = 'internal scratch']
  #allocation2 [shape = 'f32[2,32]{1,0:T(2,128)}', space=vmem, size = 0x400, scoped, tag = 'scratch operand']
  #allocation3 [shape = 's32[2]{0}', space=sflag, size = 0x8, scoped, tag = 'scratch operand']
  #allocation4 [shape = 'f32[1]{0:T(128)S(6)}', space=smem, size = 0x200, scoped, tag = 'scoped memory for _att2in2_step.1']
  #allocation15 [shape = 's32[]', space=sflag, size = 0x4, offset = 0, fixed_abs, tag = 'sflag constant byte address 0x0 - dummy sync flag']
  #allocation16 [shape = 's32[]', space=sflag, size = 0x4, offset = 0, fixed_abs, tag = 'sflag constant byte address 0x0 - dummy sync flag']
  %s0 = inlined_call_operand.vmem [shape: s32[2], index: 0, kind: input, shape index: {}]
  %s1 = inlined_call_operand.vmem [shape: bf16[98,64], index: 1, kind: input, shape index: {}]
  %s2 = inlined_call_operand.hbm [shape: f32[2,32], index: 2, kind: input, shape index: {}, may-alias: {2,17}]
  %s3 = inlined_call_operand.hbm [shape: f32[2,32], index: 3, kind: input, shape index: {}, may-alias: {3,18}]
  %s4 = inlined_call_operand.vmem [shape: f32[21,32], index: 4, kind: input, shape index: {}]
  %s5 = inlined_call_operand.vmem [shape: bf16[64,32], index: 5, kind: input, shape index: {}]
  %s6 = inlined_call_operand.vmem [shape: f32[1,32], index: 6, kind: input, shape index: {}]
  %s7 = inlined_call_operand.vmem [shape: bf16[32,32], index: 7, kind: input, shape index: {}]
  %s8 = inlined_call_operand.vmem [shape: f32[1,32], index: 8, kind: input, shape index: {}]
  %s9 = inlined_call_operand.vmem [shape: bf16[32,32], index: 9, kind: input, shape index: {}]
  %s10 = inlined_call_operand.vmem [shape: f32[1,32], index: 10, kind: input, shape index: {}]
  %s11 = inlined_call_operand.vmem [shape: f32[1,32], index: 11, kind: input, shape index: {}]
  %s12 = inlined_call_operand.<no memory space> [shape: f32[1], index: 12, kind: input, shape index: {}]
  %s13 = inlined_call_operand.vmem [shape: bf16[32,160], index: 13, kind: input, shape index: {}]
  %s14 = inlined_call_operand.vmem [shape: bf16[32,160], index: 14, kind: input, shape index: {}]
  %s15 = inlined_call_operand.vmem [shape: bf16[32,64], index: 15, kind: input, shape index: {}]
  %s16 = inlined_call_operand.vmem [shape: f32[1,160], index: 16, kind: input, shape index: {}]
  %s17 = inlined_call_operand.hbm [shape: f32[2,32], index: 17, kind: output, shape index: {0}, may-alias: {2,17}]
  %s18 = inlined_call_operand.hbm [shape: f32[2,32], index: 18, kind: output, shape index: {1}, may-alias: {3,18}]
  %19 = xla_tuple %s17, %s18
  %s20 = sld [smem:[#allocation0]]
  $region154: #{_att2in2_step.1} parent=0
    _
  %s22 = ssub.s32 1, %s20
  %s23 = scalar_select 0, %s22, %s20
  %24 = sst [smem:[#allocation4]] %s12
  $region1: #{_att2in2_step.1} parent=0
    #allocation5 [shape = 'u8[512]{0}', space=smem, size = 0x200, scoped, tag = 'input window, operand 0, single buffered']
    #allocation6 [shape = 's32[1]{0}', space=sflag, size = 0x4, scoped, tag = 'scoped memory for _att2in2_step.1']
    #allocation7 [shape = 's32[1]{0}', space=sflag, size = 0x4, scoped, tag = 'scoped memory for _att2in2_step.1']
    #allocation8 [shape = 's32[1]{0}', space=sflag, size = 0x4, scoped, tag = 'scoped memory for _att2in2_step.1']
    #allocation9 [shape = 'u8[1024]{0}', space=vmem, size = 0x400, scoped, tag = 'input window, operand 2, single buffered']
    #allocation10 [shape = 'u8[1024]{0}', space=vmem, size = 0x400, scoped, tag = 'input window, operand 3, single buffered']
    #allocation11 [shape = 's32[1]{0}', space=sflag, size = 0x4, scoped, tag = 'scoped memory for _att2in2_step.1']
    #allocation12 [shape = 'u8[1024]{0}', space=vmem, size = 0x400, scoped, tag = 'output window, operand 0, single buffered']
    #allocation13 [shape = 'u8[1024]{0}', space=vmem, size = 0x400, scoped, tag = 'output window, operand 1, single buffered']
    #allocation14 [shape = 's32[1]{0}', space=sflag, size = 0x4, scoped, tag = 'scoped memory for _att2in2_step.1']
    %25 = vsyncpa [#allocation8], 0
    %26 = vsyncpa [#allocation6], 0
    %27 = vsyncpa [#allocation11], 0
    %28 = vsyncpa [#allocation7], 0
    %29 = vsyncpa [#allocation14], 0
    // Predicated region
    $region2: #{_att2in2_step.1} parent=1 // pred_check
      _
    $region3: #{_att2in2_step.1} parent=1 // pred_check_branch
      %31 = sbr.rel (0) target = $region5
    $region4: #{_att2in2_step.1} parent=1 // pred_region
      %s33 = ssub.s32 16, 16
      %34 = vsyncadd [#allocation8], %s33
      %s36 = sshll.u32 %s0, 4
      %s37 = int_to_ptr.vmem [resolvable:$true] %s36
      %39 = dma.vmem_to_smem %s37, 16, [#allocation5], [#allocation8]
    $region5: #{_att2in2_step.1} parent=1 // pred_fallthru
      _
    // Predicated region
    $region6: #{_att2in2_step.1} parent=1 // pred_check
      _
    $region7: #{_att2in2_step.1} parent=1 // pred_check_branch
      %41 = sbr.rel (0) target = $region9
    $region8: #{_att2in2_step.1} parent=1 // pred_region
      _
    $region9: #{_att2in2_step.1} parent=1 // pred_fallthru
      _
    // Predicated region
    $region10: #{_att2in2_step.1} parent=1 // pred_check
      _
    $region11: #{_att2in2_step.1} parent=1 // pred_check_branch
      %43 = sbr.rel (0) target = $region13
    $region12: #{_att2in2_step.1} parent=1 // pred_region
      %s45 = ssub.s32 32, 32
      %46 = vsyncadd [#allocation6], %s45
      %s48 = sshll.u32 [#allocation9], 4
      %s49 = int_to_ptr.vmem [resolvable:$true] %s48
      %51 = dma.hbm_to_vmem [thread:$0]  %s2, 32, %s49, [#allocation6]
    $region13: #{_att2in2_step.1} parent=1 // pred_fallthru
      _
    // Predicated region
    $region14: #{_att2in2_step.1} parent=1 // pred_check
      _
    $region15: #{_att2in2_step.1} parent=1 // pred_check_branch
      %53 = sbr.rel (0) target = $region17
    $region16: #{_att2in2_step.1} parent=1 // pred_region
      %s55 = ssub.s32 32, 32
      %56 = vsyncadd [#allocation11], %s55
      %s58 = sshll.u32 [#allocation10], 4
      %s59 = int_to_ptr.vmem [resolvable:$true] %s58
      %61 = dma.hbm_to_vmem [thread:$0]  %s3, 32, %s59, [#allocation11]
    $region17: #{_att2in2_step.1} parent=1 // pred_fallthru
      _
    // Predicated region
    $region18: #{_att2in2_step.1} parent=1 // pred_check
      _
    $region19: #{_att2in2_step.1} parent=1 // pred_check_branch
      %63 = sbr.rel (0) target = $region21
    $region20: #{_att2in2_step.1} parent=1 // pred_region
      _
    $region21: #{_att2in2_step.1} parent=1 // pred_fallthru
      _
    // Predicated region
    $region22: #{_att2in2_step.1} parent=1 // pred_check
      _
    $region23: #{_att2in2_step.1} parent=1 // pred_check_branch
      %65 = sbr.rel (0) target = $region25
    $region24: #{_att2in2_step.1} parent=1 // pred_region
      _
    $region25: #{_att2in2_step.1} parent=1 // pred_fallthru
      _
    // Predicated region
    $region26: #{_att2in2_step.1} parent=1 // pred_check
      _
    $region27: #{_att2in2_step.1} parent=1 // pred_check_branch
      %67 = sbr.rel (0) target = $region29
    $region28: #{_att2in2_step.1} parent=1 // pred_region
      _
    $region29: #{_att2in2_step.1} parent=1 // pred_fallthru
      _
    // Predicated region
    $region30: #{_att2in2_step.1} parent=1 // pred_check
      _
    $region31: #{_att2in2_step.1} parent=1 // pred_check_branch
      %69 = sbr.rel (0) target = $region33
    $region32: #{_att2in2_step.1} parent=1 // pred_region
      _
    $region33: #{_att2in2_step.1} parent=1 // pred_fallthru
      _
    // Predicated region
    $region34: #{_att2in2_step.1} parent=1 // pred_check
      _
    $region35: #{_att2in2_step.1} parent=1 // pred_check_branch
      %71 = sbr.rel (0) target = $region37
    $region36: #{_att2in2_step.1} parent=1 // pred_region
      _
    $region37: #{_att2in2_step.1} parent=1 // pred_fallthru
      _
    // Predicated region
    $region38: #{_att2in2_step.1} parent=1 // pred_check
      _
    $region39: #{_att2in2_step.1} parent=1 // pred_check_branch
      %73 = sbr.rel (0) target = $region41
    $region40: #{_att2in2_step.1} parent=1 // pred_region
      _
    $region41: #{_att2in2_step.1} parent=1 // pred_fallthru
      _
    // Predicated region
    $region42: #{_att2in2_step.1} parent=1 // pred_check
      _
    $region43: #{_att2in2_step.1} parent=1 // pred_check_branch
      %75 = sbr.rel (0) target = $region45
    $region44: #{_att2in2_step.1} parent=1 // pred_region
      _
    $region45: #{_att2in2_step.1} parent=1 // pred_fallthru
      _
    // Predicated region
    $region46: #{_att2in2_step.1} parent=1 // pred_check
      _
    $region47: #{_att2in2_step.1} parent=1 // pred_check_branch
      %77 = sbr.rel (0) target = $region49
    $region48: #{_att2in2_step.1} parent=1 // pred_region
      _
    $region49: #{_att2in2_step.1} parent=1 // pred_fallthru
      _
    // Predicated region
    $region50: #{_att2in2_step.1} parent=1 // pred_check
      _
    $region51: #{_att2in2_step.1} parent=1 // pred_check_branch
      %79 = sbr.rel (0) target = $region53
    $region52: #{_att2in2_step.1} parent=1 // pred_region
      _
    $region53: #{_att2in2_step.1} parent=1 // pred_fallthru
      _
    // Predicated region
    $region54: #{_att2in2_step.1} parent=1 // pred_check
      _
    $region55: #{_att2in2_step.1} parent=1 // pred_check_branch
      %81 = sbr.rel (0) target = $region57
    $region56: #{_att2in2_step.1} parent=1 // pred_region
      _
    $region57: #{_att2in2_step.1} parent=1 // pred_fallthru
      _
    // Predicated region
    $region58: #{_att2in2_step.1} parent=1 // pred_check
      _
    $region59: #{_att2in2_step.1} parent=1 // pred_check_branch
      %83 = sbr.rel (0) target = $region61
    $region60: #{_att2in2_step.1} parent=1 // pred_region
      _
    $region61: #{_att2in2_step.1} parent=1 // pred_fallthru
      _
    // Predicated region
    $region62: #{_att2in2_step.1} parent=1 // pred_check
      _
    $region63: #{_att2in2_step.1} parent=1 // pred_check_branch
      %85 = sbr.rel (0) target = $region65
    $region64: #{_att2in2_step.1} parent=1 // pred_region
      _
    $region65: #{_att2in2_step.1} parent=1 // pred_fallthru
      _
    // Predicated region
    $region66: #{_att2in2_step.1} parent=1 // pred_check
      _
    $region67: #{_att2in2_step.1} parent=1 // pred_check_branch
      %87 = sbr.rel (0) target = $region69
    $region68: #{_att2in2_step.1} parent=1 // pred_region
      %88 = dma.done [#allocation8], 16
    $region69: #{_att2in2_step.1} parent=1 // pred_fallthru
      _
    // Predicated region
    $region70: #{_att2in2_step.1} parent=1 // pred_check
      _
    $region71: #{_att2in2_step.1} parent=1 // pred_check_branch
      %90 = sbr.rel (0) target = $region73
    $region72: #{_att2in2_step.1} parent=1 // pred_region
      %91 = dma.done [#allocation6], 32
    $region73: #{_att2in2_step.1} parent=1 // pred_fallthru
      _
    // Predicated region
    $region74: #{_att2in2_step.1} parent=1 // pred_check
      _
    $region75: #{_att2in2_step.1} parent=1 // pred_check_branch
      %93 = sbr.rel (0) target = $region77
    $region76: #{_att2in2_step.1} parent=1 // pred_region
      %94 = dma.done [#allocation11], 32
    $region77: #{_att2in2_step.1} parent=1 // pred_fallthru
      _
    %95 = sfence
    %s97 = sld [smem:[#allocation5]]
    %s98 = scalar_lea.vmem %s4, %s97
    %p100 = scmp.lt.u32.totalorder 1, 8
    %p101 = pneg %p100
    // Predicated region
    $region78: #{_att2in2_step.1} parent=1 // pred_check
      _
    $region79: #{_att2in2_step.1} parent=1 // pred_check_branch
      %103 = sbr.rel (%p100) target = $region81
    $region80: #{_att2in2_step.1} parent=1 // pred_region
      %s119 = sand.u32 1, 7
      %p120 = scmp.eq.s32.totalorder %s119, 0
      %p121 = pneg %p120
      // Predicated region
      $region93: #{_att2in2_step.1} parent=80 // pred_check
        _
      $region94: #{_att2in2_step.1} parent=80 // pred_check_branch
        %123 = sbr.rel (%p120) target = $region96
      $region95: #{_att2in2_step.1} parent=80 // pred_region
        %s124 = sand.u32 1, 7
        %s125 = ssub.s32 1, %s124
        %s126 = scalar_lea.vmem %s98, %s125
        %s127 = ssub.s32 1, %s124
        %s128 = scalar_lea.vmem [#allocation2], %s127
        %s129 = sshll.u32 1, %s124
        %s130 = ssub.s32 %s129, 1
        loop: start=0, step=1, limit=1
        $region97: #{_att2in2_step.1} parent=95 // loop_pre_header
          _
        $region98: #{_att2in2_step.1} parent=95 // loop_header
          %s132 = sphi 0, %s136
          %p133 = scmp.ge.s32.totalorder %s132, 1
          %s137 = sphi %s126, %s126
          %s138 = sphi %s128, %s128
        $region99: #{_att2in2_step.1} parent=95 // loop_header_branch
          %135 = sbr.rel (%p133) target = $region103
        $region100: #{_att2in2_step.1} parent=95 // loop_body
          %v139 = vld [vmem:[%s137] sm:%s130]
          %140 = vst [vmem:[%s138] sm:%s130] %v139
        $region101: #{_att2in2_step.1} parent=95 // loop_footer
          %s136 = sadd.s32 1, %s132
        $region102: #{_att2in2_step.1} parent=95 // loop_footer_branch
          %131 = sbr.rel target = $region98
        $region103: #{_att2in2_step.1} parent=95 // loop_exit
          _
      $region96: #{_att2in2_step.1} parent=80 // pred_fallthru
        _
    $region81: #{_att2in2_step.1} parent=1 // pred_fallthru
      _
    // Predicated region
    $region82: #{_att2in2_step.1} parent=1 // pred_check
      %p104 = pneg %p100
    $region83: #{_att2in2_step.1} parent=1 // pred_check_branch
      %106 = sbr.rel (%p104) target = $region85
    $region84: #{_att2in2_step.1} parent=1 // pred_region
      %s107 = sshll.u32 1, 1
      %s108 = ssub.s32 %s107, 1
      loop: start=0, step=1, limit=1
      $region86: #{_att2in2_step.1} parent=84 // loop_pre_header
        _
      $region87: #{_att2in2_step.1} parent=84 // loop_header
        %s110 = sphi 0, %s114
        %p111 = scmp.ge.s32.totalorder %s110, 1
        %s115 = sphi %s98, %s98
        %s116 = sphi [#allocation2], [#allocation2]
      $region88: #{_att2in2_step.1} parent=84 // loop_header_branch
        %113 = sbr.rel (%p111) target = $region92
      $region89: #{_att2in2_step.1} parent=84 // loop_body
        %v117 = vld [vmem:[%s115] sm:%s108]
        %118 = vst [vmem:[%s116] sm:%s108] %v117
      $region90: #{_att2in2_step.1} parent=84 // loop_footer
        %s114 = sadd.s32 1, %s110
      $region91: #{_att2in2_step.1} parent=84 // loop_footer_branch
        %109 = sbr.rel target = $region87
      $region92: #{_att2in2_step.1} parent=84 // loop_exit
        _
    $region85: #{_att2in2_step.1} parent=1 // pred_fallthru
      _
    // Predicated region
    $region104: #{_att2in2_step.1} parent=1 // pred_check
      _
    $region105: #{_att2in2_step.1} parent=1 // pred_check_branch
      %143 = sbr.rel (0) target = $region107
    $region106: #{_att2in2_step.1} parent=1 // pred_region
      %144 = vsyncadd [#allocation3], 16
    $region107: #{_att2in2_step.1} parent=1 // pred_fallthru
      _
    %s145 = sld [smem:[#allocation5 + $0x1]]
    %s146 = scalar_lea.vmem %s4, %s145
    %s147 = scalar_lea.vmem [#allocation2], 1
    %s148 = scalar_lea.sflag [#allocation3], 1
    %p150 = scmp.lt.u32.totalorder 1, 8
    %p151 = pneg %p150
    // Predicated region
    $region108: #{_att2in2_step.1} parent=1 // pred_check
      _
    $region109: #{_att2in2_step.1} parent=1 // pred_check_branch
      %153 = sbr.rel (%p150) target = $region111
    $region110: #{_att2in2_step.1} parent=1 // pred_region
      %s169 = sand.u32 1, 7
      %p170 = scmp.eq.s32.totalorder %s169, 0
      %p171 = pneg %p170
      // Predicated region
      $region123: #{_att2in2_step.1} parent=110 // pred_check
        _
      $region124: #{_att2in2_step.1} parent=110 // pred_check_branch
        %173 = sbr.rel (%p170) target = $region126
      $region125: #{_att2in2_step.1} parent=110 // pred_region
        %s174 = sand.u32 1, 7
        %s175 = ssub.s32 1, %s174
        %s176 = scalar_lea.vmem %s146, %s175
        %s177 = ssub.s32 1, %s174
        %s178 = scalar_lea.vmem %s147, %s177 [#allocation2]
        %s179 = sshll.u32 1, %s174
        %s180 = ssub.s32 %s179, 1
        loop: start=0, step=1, limit=1
        $region127: #{_att2in2_step.1} parent=125 // loop_pre_header
          _
        $region128: #{_att2in2_step.1} parent=125 // loop_header
          %s182 = sphi 0, %s186
          %p183 = scmp.ge.s32.totalorder %s182, 1
          %s187 = sphi %s176, %s176
          %s188 = sphi %s178, %s178
        $region129: #{_att2in2_step.1} parent=125 // loop_header_branch
          %185 = sbr.rel (%p183) target = $region133
        $region130: #{_att2in2_step.1} parent=125 // loop_body
          %v189 = vld [vmem:[%s187] sm:%s180]
          %190 = vst [vmem:[%s188] sm:%s180] %v189
        $region131: #{_att2in2_step.1} parent=125 // loop_footer
          %s186 = sadd.s32 1, %s182
        $region132: #{_att2in2_step.1} parent=125 // loop_footer_branch
          %181 = sbr.rel target = $region128
        $region133: #{_att2in2_step.1} parent=125 // loop_exit
          _
      $region126: #{_att2in2_step.1} parent=110 // pred_fallthru
        _
    $region111: #{_att2in2_step.1} parent=1 // pred_fallthru
      _
    // Predicated region
    $region112: #{_att2in2_step.1} parent=1 // pred_check
      %p154 = pneg %p150
    $region113: #{_att2in2_step.1} parent=1 // pred_check_branch
      %156 = sbr.rel (%p154) target = $region115
    $region114: #{_att2in2_step.1} parent=1 // pred_region
      %s157 = sshll.u32 1, 1
      %s158 = ssub.s32 %s157, 1
      loop: start=0, step=1, limit=1
      $region116: #{_att2in2_step.1} parent=114 // loop_pre_header
        _
      $region117: #{_att2in2_step.1} parent=114 // loop_header
        %s160 = sphi 0, %s164
        %p161 = scmp.ge.s32.totalorder %s160, 1
        %s165 = sphi %s146, %s146
        %s166 = sphi %s147, %s147
      $region118: #{_att2in2_step.1} parent=114 // loop_header_branch
        %163 = sbr.rel (%p161) target = $region122
      $region119: #{_att2in2_step.1} parent=114 // loop_body
        %v167 = vld [vmem:[%s165] sm:%s158]
        %168 = vst [vmem:[%s166] sm:%s158] %v167
      $region120: #{_att2in2_step.1} parent=114 // loop_footer
        %s164 = sadd.s32 1, %s160
      $region121: #{_att2in2_step.1} parent=114 // loop_footer_branch
        %159 = sbr.rel target = $region117
      $region122: #{_att2in2_step.1} parent=114 // loop_exit
        _
    $region115: #{_att2in2_step.1} parent=1 // pred_fallthru
      _
    // Predicated region
    $region134: #{_att2in2_step.1} parent=1 // pred_check
      _
    $region135: #{_att2in2_step.1} parent=1 // pred_check_branch
      %193 = sbr.rel (0) target = $region137
    $region136: #{_att2in2_step.1} parent=1 // pred_region
      %194 = vsyncadd %s148, 16
    $region137: #{_att2in2_step.1} parent=1 // pred_fallthru
      _
    %v195 = vld [vmem:[#allocation9] sm:$0x3]
    %v196 = vld [vmem:[#allocation10] sm:$0x3]
    %v197 = vpack.c.bf16 %v195, %v195
    %v198 = vld [vmem:[%s1] sm:$0xf]
    %v199 = vld [vmem:[%s1 + $0x4] sm:$0xf]
    %v200 = vld [vmem:[%s1 + $0x8] sm:$0xf]
    %v201 = vld [vmem:[%s1 + $0xc] sm:$0xf]
    %v202 = vld [vmem:[%s1 + $0x10] sm:$0xf]
    %v203 = vld [vmem:[%s1 + $0x14] sm:$0xf]
    %v204 = vld [vmem:[%s1 + $0x18] sm:$0xf]
    %v205 = vld [vmem:[%s1 + $0x1c] sm:$0xf]
    %v206 = vld [vmem:[%s1 + $0x20] sm:$0xf]
    %v207 = vld [vmem:[%s1 + $0x24] sm:$0xf]
    %v208 = vld [vmem:[%s1 + $0x28] sm:$0xf]
    %v209 = vld [vmem:[%s1 + $0x2c] sm:$0xf]
    %v210 = vld [vmem:[%s1 + $0x30] sm:$0x1]
    %v211 = vld [vmem:[%s5] sm:$0xf]
    %v212 = vld [vmem:[%s5 + $0x4] sm:$0xf]
    %v213 = vld [vmem:[%s5 + $0x8] sm:$0xf]
    %v214 = vld [vmem:[%s5 + $0xc] sm:$0xf]
    %v215 = vld [vmem:[%s5 + $0x10] sm:$0xf]
    %v216 = vld [vmem:[%s5 + $0x14] sm:$0xf]
    %v217 = vld [vmem:[%s5 + $0x18] sm:$0xf]
    %v218 = vld [vmem:[%s5 + $0x1c] sm:$0xf]
    %v219 = vld [vmem:[%s6] sm:$0x1]
    %v221 = vlaneseq
    %v222 = vshrl.u32 %v221, 7
    %v223 = vsub.s32 0, %v222
    %v224 = vrot.slane %v219, %v223
    %v239 = vunpack.c.l.b16 %v198
    %v240 = vunpack.c.l.b16 %v199
    %v241 = vunpack.c.l.b16 %v200
    %v242 = vunpack.c.l.b16 %v201
    %v243 = vunpack.c.l.b16 %v202
    %v244 = vunpack.c.l.b16 %v203
    %v245 = vunpack.c.l.b16 %v204
    %v246 = vunpack.c.l.b16 %v205
    %v247 = vunpack.c.l.b16 %v206
    %v248 = vunpack.c.l.b16 %v207
    %v249 = vunpack.c.l.b16 %v208
    %v250 = vunpack.c.l.b16 %v209
    %v251 = vunpack.c.l.b16 %v210
    %v252 = vpack.c.b16 %v240, %v239
    %v253 = vpack.c.b16 %v242, %v241
    %v254 = vpack.c.b16 %v244, %v243
    %v255 = vpack.c.b16 %v246, %v245
    %v256 = vpack.c.b16 %v248, %v247
    %v257 = vpack.c.b16 %v250, %v249
    %v258 = vpack.c.b16 %v251, %v251
    %v267 = vunpack.c.l.b16 %v211
    %v268 = vunpack.c.l.b16 %v212
    %v269 = vunpack.c.l.b16 %v213
    %v270 = vunpack.c.l.b16 %v214
    %v271 = vunpack.c.l.b16 %v215
    %v272 = vunpack.c.l.b16 %v216
    %v273 = vunpack.c.l.b16 %v217
    %v274 = vunpack.c.l.b16 %v218
    %v275 = vpack.c.b16 %v268, %v267
    %v276 = vpack.c.b16 %v270, %v269
    %v277 = vpack.c.b16 %v272, %v271
    %v278 = vpack.c.b16 %v274, %v273
    %vm283 = vcmask 523264
    %v285 = vsel %vm283, %v252, 0
    %v288 = vsel %vm283, %v253, 0
    %v291 = vsel %vm283, %v254, 0
    %v294 = vsel %vm283, %v255, 0
    %v297 = vsel %vm283, %v256, 0
    %v300 = vsel %vm283, %v257, 0
    %v303 = vsel %vm283, %v258, 0
    %305 = vmatprep.subr.bf16.mxu0 0
    %306 = vmatpush1.bf16.msra.mxu0 0
    %307 = vmatprep.subr.bf16.mxu0 0
    %308 = vmatpush1.bf16.msra.mxu0 0
    %309 = vmatprep.subr.bf16.mxu0 0
    %310 = vmatpush1.bf16.msra.mxu0 0
    %311 = vmatprep.subr.bf16.mxu0 0
    %312 = vmatpush1.bf16.msra.mxu0 0
    %313 = vmatprep.subr.bf16.mxu0 0
    %314 = vmatpush1.bf16.msra.mxu0 %v278
    %315 = vmatprep.subr.bf16.mxu0 0
    %316 = vmatpush1.bf16.msra.mxu0 %v277
    %317 = vmatprep.subr.bf16.mxu0 0
    %318 = vmatpush1.bf16.msra.mxu0 %v276
    %319 = vmatprep.subr.bf16.mxu0 0
    %320 = vmatpush1.bf16.msra.mxu0 %v275
    %321 = vmatprep.subr.bf16.mxu0 0
    %322 = vmatpush2.bf16.msra.mxu0 0
    %323 = vmatprep.subr.bf16.mxu0 0
    %324 = vmatpush2.bf16.msra.mxu0 0
    %325 = vmatprep.subr.bf16.mxu0 0
    %326 = vmatpush2.bf16.msra.mxu0 0
    %327 = vmatprep.subr.bf16.mxu0 0
    %328 = vmatpush2.bf16.msra.mxu0 0
    %329 = vmatprep.subr.bf16.mxu0 0
    %330 = vmatpush2.bf16.msra.mxu0 0
    %331 = vmatprep.subr.bf16.mxu0 0
    %332 = vmatpush2.bf16.msra.mxu0 0
    %333 = vmatprep.subr.bf16.mxu0 0
    %334 = vmatpush2.bf16.msra.mxu0 0
    %335 = vmatprep.subr.bf16.mxu0 0
    %336 = vmatpush2.bf16.msra.mxu0 0
    %337 = vmatprep.mubr.bf16.mxu0 0
    %338 = vmatmul.mubr.bf16.gmra.mxu0 %v285
    %v339 = vpop.f32.mrf.mxu0
    %v340 = vadd.f32 %v224, %v339
    %v341 = vpop.f32.mrf.mxu0
    %v342 = vpop.f32.mrf.mxu0
    %v343 = vadd.f32 %v224, %v342
    %v344 = vpop.f32.mrf.mxu0
    %345 = vmatprep.mubr.bf16.mxu0 0
    %346 = vmatmul.mubr.bf16.gmra.mxu0 %v288
    %v347 = vpop.f32.mrf.mxu0
    %v348 = vadd.f32 %v224, %v347
    %v349 = vpop.f32.mrf.mxu0
    %v350 = vpop.f32.mrf.mxu0
    %v351 = vadd.f32 %v224, %v350
    %v352 = vpop.f32.mrf.mxu0
    %353 = vmatprep.mubr.bf16.mxu0 0
    %354 = vmatmul.mubr.bf16.gmra.mxu0 %v291
    %v355 = vpop.f32.mrf.mxu0
    %v356 = vadd.f32 %v224, %v355
    %v357 = vpop.f32.mrf.mxu0
    %v358 = vpop.f32.mrf.mxu0
    %v359 = vadd.f32 %v224, %v358
    %v360 = vpop.f32.mrf.mxu0
    %361 = vmatprep.mubr.bf16.mxu0 0
    %362 = vmatmul.mubr.bf16.gmra.mxu0 %v294
    %v363 = vpop.f32.mrf.mxu0
    %v364 = vadd.f32 %v224, %v363
    %v365 = vpop.f32.mrf.mxu0
    %v366 = vpop.f32.mrf.mxu0
    %v367 = vadd.f32 %v224, %v366
    %v368 = vpop.f32.mrf.mxu0
    %369 = vmatprep.mubr.bf16.mxu0 0
    %370 = vmatmul.mubr.bf16.gmra.mxu0 %v297
    %v371 = vpop.f32.mrf.mxu0
    %v372 = vadd.f32 %v224, %v371
    %v373 = vpop.f32.mrf.mxu0
    %v374 = vpop.f32.mrf.mxu0
    %v375 = vadd.f32 %v224, %v374
    %v376 = vpop.f32.mrf.mxu0
    %377 = vmatprep.mubr.bf16.mxu0 0
    %378 = vmatmul.mubr.bf16.gmra.mxu0 %v300
    %v379 = vpop.f32.mrf.mxu0
    %v380 = vadd.f32 %v224, %v379
    %v381 = vpop.f32.mrf.mxu0
    %v382 = vpop.f32.mrf.mxu0
    %v383 = vadd.f32 %v224, %v382
    %v384 = vpop.f32.mrf.mxu0
    %385 = vmatprep.mubr.bf16.mxu0 0
    %386 = vmatmul.mubr.bf16.gmra.mxu0 %v303
    %v387 = vpop.f32.mrf.mxu0
    %v388 = vadd.f32 %v224, %v387
    %v389 = vpop.f32.mrf.mxu0
    %v390 = vpop.f32.mrf.mxu0
    %v391 = vpop.f32.mrf.mxu0
    %392 = vdwg.mxu0
    %v393 = vmax.f32 %v340, 0.0
    %v394 = vmax.f32 %v343, 0.0
    %v395 = vmax.f32 %v348, 0.0
    %v396 = vmax.f32 %v351, 0.0
    %v397 = vmax.f32 %v356, 0.0
    %v398 = vmax.f32 %v359, 0.0
    %v399 = vmax.f32 %v364, 0.0
    %v400 = vmax.f32 %v367, 0.0
    %v401 = vmax.f32 %v372, 0.0
    %v402 = vmax.f32 %v375, 0.0
    %v403 = vmax.f32 %v380, 0.0
    %v404 = vmax.f32 %v383, 0.0
    %v405 = vmax.f32 %v388, 0.0
    %v406 = vpack.c.bf16 %v394, %v393
    %v407 = vpack.c.bf16 %v396, %v395
    %v408 = vpack.c.bf16 %v398, %v397
    %v409 = vpack.c.bf16 %v400, %v399
    %v410 = vpack.c.bf16 %v402, %v401
    %v411 = vpack.c.bf16 %v404, %v403
    %v412 = vpack.c.bf16 %v405, %v405
    %v413 = vld [vmem:[%s7] sm:$0xf]
    %v414 = vld [vmem:[%s7 + $0x4] sm:$0xf]
    %v415 = vld [vmem:[%s7 + $0x8] sm:$0xf]
    %v416 = vld [vmem:[%s7 + $0xc] sm:$0xf]
    %v417 = vld [vmem:[%s8] sm:$0x1]
    %v419 = vlaneseq
    %v420 = vshrl.u32 %v419, 7
    %v421 = vsub.s32 0, %v420
    %v422 = vrot.slane %v417, %v421
    %v428 = vunpack.c.l.b16 %v413
    %v429 = vunpack.c.l.b16 %v414
    %v430 = vunpack.c.l.b16 %v415
    %v431 = vunpack.c.l.b16 %v416
    %v432 = vpack.c.b16 %v429, %v428
    %v433 = vpack.c.b16 %v431, %v430
    %vm436 = vcmask 261120
    %v438 = vsel %vm436, %v406, 0
    %v441 = vsel %vm436, %v407, 0
    %v444 = vsel %vm436, %v408, 0
    %v447 = vsel %vm436, %v409, 0
    %v450 = vsel %vm436, %v410, 0
    %v453 = vsel %vm436, %v411, 0
    %v456 = vsel %vm436, %v412, 0
    %458 = vmatprep.subr.bf16.mxu0 0
    %459 = vmatpush1.bf16.msra.mxu0 0
    %460 = vmatprep.subr.bf16.mxu0 0
    %461 = vmatpush1.bf16.msra.mxu0 0
    %462 = vmatprep.subr.bf16.mxu0 0
    %463 = vmatpush1.bf16.msra.mxu0 0
    %464 = vmatprep.subr.bf16.mxu0 0
    %465 = vmatpush1.bf16.msra.mxu0 0
    %466 = vmatprep.subr.bf16.mxu0 0
    %467 = vmatpush1.bf16.msra.mxu0 0
    %468 = vmatprep.subr.bf16.mxu0 0
    %469 = vmatpush1.bf16.msra.mxu0 0
    %470 = vmatprep.subr.bf16.mxu0 0
    %471 = vmatpush1.bf16.msra.mxu0 %v433
    %472 = vmatprep.subr.bf16.mxu0 0
    %473 = vmatpush1.bf16.msra.mxu0 %v432
    %474 = vmatprep.subr.bf16.mxu0 0
    %475 = vmatpush2.bf16.msra.mxu0 0
    %476 = vmatprep.subr.bf16.mxu0 0
    %477 = vmatpush2.bf16.msra.mxu0 0
    %478 = vmatprep.subr.bf16.mxu0 0
    %479 = vmatpush2.bf16.msra.mxu0 0
    %480 = vmatprep.subr.bf16.mxu0 0
    %481 = vmatpush2.bf16.msra.mxu0 0
    %482 = vmatprep.subr.bf16.mxu0 0
    %483 = vmatpush2.bf16.msra.mxu0 0
    %484 = vmatprep.subr.bf16.mxu0 0
    %485 = vmatpush2.bf16.msra.mxu0 0
    %486 = vmatprep.subr.bf16.mxu0 0
    %487 = vmatpush2.bf16.msra.mxu0 0
    %488 = vmatprep.subr.bf16.mxu0 0
    %489 = vmatpush2.bf16.msra.mxu0 0
    %490 = vmatprep.mubr.bf16.mxu0 0
    %491 = vmatmul.mubr.bf16.gmra.mxu0 %v438
    %v492 = vpop.f32.mrf.mxu0
    %v493 = vadd.f32 %v422, %v492
    %v494 = vpop.f32.mrf.mxu0
    %v495 = vpop.f32.mrf.mxu0
    %v496 = vadd.f32 %v422, %v495
    %v497 = vpop.f32.mrf.mxu0
    %498 = vmatprep.mubr.bf16.mxu0 0
    %499 = vmatmul.mubr.bf16.gmra.mxu0 %v441
    %v500 = vpop.f32.mrf.mxu0
    %v501 = vadd.f32 %v422, %v500
    %v502 = vpop.f32.mrf.mxu0
    %v503 = vpop.f32.mrf.mxu0
    %v504 = vadd.f32 %v422, %v503
    %v505 = vpop.f32.mrf.mxu0
    %506 = vmatprep.mubr.bf16.mxu0 0
    %507 = vmatmul.mubr.bf16.gmra.mxu0 %v444
    %v508 = vpop.f32.mrf.mxu0
    %v509 = vadd.f32 %v422, %v508
    %v510 = vpop.f32.mrf.mxu0
    %v511 = vpop.f32.mrf.mxu0
    %v512 = vadd.f32 %v422, %v511
    %v513 = vpop.f32.mrf.mxu0
    %514 = vmatprep.mubr.bf16.mxu0 0
    %515 = vmatmul.mubr.bf16.gmra.mxu0 %v447
    %v516 = vpop.f32.mrf.mxu0
    %v517 = vadd.f32 %v422, %v516
    %v518 = vpop.f32.mrf.mxu0
    %v519 = vpop.f32.mrf.mxu0
    %v520 = vadd.f32 %v422, %v519
    %v521 = vpop.f32.mrf.mxu0
    %522 = vmatprep.mubr.bf16.mxu0 0
    %523 = vmatmul.mubr.bf16.gmra.mxu0 %v450
    %v524 = vpop.f32.mrf.mxu0
    %v525 = vadd.f32 %v422, %v524
    %v526 = vpop.f32.mrf.mxu0
    %v527 = vpop.f32.mrf.mxu0
    %v528 = vadd.f32 %v422, %v527
    %v529 = vpop.f32.mrf.mxu0
    %530 = vmatprep.mubr.bf16.mxu0 0
    %531 = vmatmul.mubr.bf16.gmra.mxu0 %v453
    %v532 = vpop.f32.mrf.mxu0
    %v533 = vadd.f32 %v422, %v532
    %v534 = vpop.f32.mrf.mxu0
    %v535 = vpop.f32.mrf.mxu0
    %v536 = vadd.f32 %v422, %v535
    %v537 = vpop.f32.mrf.mxu0
    %538 = vmatprep.mubr.bf16.mxu0 0
    %539 = vmatmul.mubr.bf16.gmra.mxu0 %v456
    %v540 = vpop.f32.mrf.mxu0
    %v541 = vadd.f32 %v422, %v540
    %v542 = vpop.f32.mrf.mxu0
    %v543 = vpop.f32.mrf.mxu0
    %v544 = vpop.f32.mrf.mxu0
    %545 = vdwg.mxu0
    %v546 = vld [vmem:[%s9] sm:$0xf]
    %v547 = vld [vmem:[%s9 + $0x4] sm:$0xf]
    %v548 = vld [vmem:[%s9 + $0x8] sm:$0xf]
    %v549 = vld [vmem:[%s9 + $0xc] sm:$0xf]
    %v550 = vld [vmem:[%s10] sm:$0x1]
    %v552 = vlaneseq
    %v553 = vshrl.u32 %v552, 7
    %v554 = vsub.s32 0, %v553
    %v555 = vrot.slane %v550, %v554
    %v561 = vunpack.c.l.b16 %v546
    %v562 = vunpack.c.l.b16 %v547
    %v563 = vunpack.c.l.b16 %v548
    %v564 = vunpack.c.l.b16 %v549
    %v565 = vpack.c.b16 %v562, %v561
    %v566 = vpack.c.b16 %v564, %v563
    %v570 = vsel %vm436, %v197, 0
    %572 = vmatprep.subr.bf16.mxu0 0
    %573 = vmatpush1.bf16.msra.mxu0 0
    %574 = vmatprep.subr.bf16.mxu0 0
    %575 = vmatpush1.bf16.msra.mxu0 0
    %576 = vmatprep.subr.bf16.mxu0 0
    %577 = vmatpush1.bf16.msra.mxu0 0
    %578 = vmatprep.subr.bf16.mxu0 0
    %579 = vmatpush1.bf16.msra.mxu0 0
    %580 = vmatprep.subr.bf16.mxu0 0
    %581 = vmatpush1.bf16.msra.mxu0 0
    %582 = vmatprep.subr.bf16.mxu0 0
    %583 = vmatpush1.bf16.msra.mxu0 0
    %584 = vmatprep.subr.bf16.mxu0 0
    %585 = vmatpush1.bf16.msra.mxu0 %v566
    %586 = vmatprep.subr.bf16.mxu0 0
    %587 = vmatpush1.bf16.msra.mxu0 %v565
    %588 = vmatprep.subr.bf16.mxu0 0
    %589 = vmatpush2.bf16.msra.mxu0 0
    %590 = vmatprep.subr.bf16.mxu0 0
    %591 = vmatpush2.bf16.msra.mxu0 0
    %592 = vmatprep.subr.bf16.mxu0 0
    %593 = vmatpush2.bf16.msra.mxu0 0
    %594 = vmatprep.subr.bf16.mxu0 0
    %595 = vmatpush2.bf16.msra.mxu0 0
    %596 = vmatprep.subr.bf16.mxu0 0
    %597 = vmatpush2.bf16.msra.mxu0 0
    %598 = vmatprep.subr.bf16.mxu0 0
    %599 = vmatpush2.bf16.msra.mxu0 0
    %600 = vmatprep.subr.bf16.mxu0 0
    %601 = vmatpush2.bf16.msra.mxu0 0
    %602 = vmatprep.subr.bf16.mxu0 0
    %603 = vmatpush2.bf16.msra.mxu0 0
    %604 = vmatprep.mubr.bf16.mxu0 0
    %605 = vmatmul.mubr.bf16.gmra.mxu0 %v570
    %v606 = vpop.f32.mrf.mxu0
    %v607 = vadd.f32 %v555, %v606
    %v608 = vpop.f32.mrf.mxu0
    %v609 = vpop.f32.mrf.mxu0
    %v610 = vpop.f32.mrf.mxu0
    %611 = vdwg.mxu0
    %v612 = vld [vmem:[%s11] sm:$0x1]
    %s613 = sld [smem:[#allocation4]]
    %v614 = vlaneseq
    %v615 = vshrl.u32 %v614, 7
    %v616 = vsub.s32 0, %v615
    %v617 = vrot.slane %v607, %v616
    %v618 = vadd.f32 %v493, %v617
    %v619 = vadd.f32 %v496, %v617
    %v620 = vadd.f32 %v501, %v617
    %v621 = vadd.f32 %v504, %v617
    %v622 = vadd.f32 %v509, %v617
    %v623 = vadd.f32 %v512, %v617
    %v624 = vadd.f32 %v517, %v617
    %v625 = vtanh.pop %v618
    %v626 = vtanh.pop %v619
    %v627 = vtanh.pop %v620
    %v628 = vtanh.pop %v621
    %v629 = vtanh.pop %v622
    %v630 = vtanh.pop %v623
    %v631 = vtanh.pop %v624
    %v633 = vlaneseq
    %v634 = vshrl.u32 %v633, 7
    %v635 = vsub.s32 0, %v634
    %v636 = vrot.slane %v612, %v635
    %v638 = vmul.f32 %v625, %v636
    %v639 = vmul.f32 %v626, %v636
    %v640 = vmul.f32 %v627, %v636
    %v641 = vmul.f32 %v628, %v636
    %v642 = vmul.f32 %v629, %v636
    %v643 = vmul.f32 %v630, %v636
    %v644 = vmul.f32 %v631, %v636
    %v645 = vsel %vm436, %v638, 0.0
    %646 = vadd.xlane.f32.xlu0 %v645
    %v647 = vpop.xlane.xlu0 %646
    %v648 = vsel %vm436, %v639, 0.0
    %649 = vadd.xlane.f32.xlu0 %v648
    %v650 = vpop.xlane.xlu0 %649
    %v651 = vsel %vm436, %v640, 0.0
    %652 = vadd.xlane.f32.xlu0 %v651
    %v653 = vpop.xlane.xlu0 %652
    %v654 = vsel %vm436, %v641, 0.0
    %655 = vadd.xlane.f32.xlu0 %v654
    %v656 = vpop.xlane.xlu0 %655
    %v657 = vsel %vm436, %v642, 0.0
    %658 = vadd.xlane.f32.xlu0 %v657
    %v659 = vpop.xlane.xlu0 %658
    %v660 = vsel %vm436, %v643, 0.0
    %661 = vadd.xlane.f32.xlu0 %v660
    %v662 = vpop.xlane.xlu0 %661
    %vm663 = vcmask 253952
    %v664 = vsel %vm663, %v644, 0.0
    %665 = vadd.xlane.f32.xlu0 %v664
    %v666 = vpop.xlane.xlu0 %665
    %v667 = vstv %s613
    %v668 = vadd.f32 %v647, %v667
    %v669 = vadd.f32 %v650, %v667
    %v670 = vadd.f32 %v653, %v667
    %v671 = vadd.f32 %v656, %v667
    %v672 = vadd.f32 %v659, %v667
    %v673 = vadd.f32 %v662, %v667
    %v674 = vadd.f32 %v666, %v667
    %v675 = vmax.f32 %v668, %v672
    %v676 = vmax.f32 %v669, %v673
    %vm677 = vcmask 1040384
    %v678 = vsel %vm677, %v674, -inf
    %v679 = vmax.f32 %v670, %v678
    %v680 = vmax.f32 %v675, %v676
    %v681 = vmax.f32 %v679, %v671
    %v682 = vmax.f32 %v680, %v681
    %v683 = vrot.slane %v682, 4
    %v684 = vmax.f32 %v682, %v683
    %v685 = vrot.slane %v684, 2
    %v686 = vmax.f32 %v684, %v685
    %v687 = vrot.slane %v686, 1
    %v688 = vmax.f32 %v686, %v687
    %v689 = vsub.f32 %v668, %v688
    %v690 = vsub.f32 %v669, %v688
    %v691 = vsub.f32 %v670, %v688
    %v692 = vsub.f32 %v671, %v688
    %v693 = vsub.f32 %v672, %v688
    %v694 = vsub.f32 %v673, %v688
    %v695 = vsub.f32 %v674, %v688
    %v696 = vmul.f32 %v689, 1.442695
    %v697 = vpow.pop %v696
    %v698 = vmul.f32 %v690, 1.442695
    %v699 = vpow.pop %v698
    %v700 = vmul.f32 %v691, 1.442695
    %v701 = vpow.pop %v700
    %v702 = vmul.f32 %v692, 1.442695
    %v703 = vpow.pop %v702
    %v704 = vmul.f32 %v693, 1.442695
    %v705 = vpow.pop %v704
    %v706 = vmul.f32 %v694, 1.442695
    %v707 = vpow.pop %v706
    %v708 = vmul.f32 %v695, 1.442695
    %v709 = vpow.pop %v708
    %v710 = vadd.f32 %v697, %v699
    %v711 = vadd.f32 %v710, %v701
    %v712 = vadd.f32 %v711, %v703
    %v713 = vadd.f32 %v712, %v705
    %v714 = vadd.f32 %v713, %v707
    %v715 = vsel %vm677, %v709, 0.0
    %v716 = vadd.f32 %v714, %v715
    %v717 = vrot.slane %v716, 4
    %v718 = vadd.f32 %v716, %v717
    %v719 = vrot.slane %v718, 2
    %v720 = vadd.f32 %v718, %v719
    %v721 = vrot.slane %v720, 1
    %v722 = vadd.f32 %v720, %v721
    %v723 = vmul.f32 %v697, %v393
    %v724 = vmul.f32 %v699, %v394
    %v725 = vmul.f32 %v701, %v395
    %v726 = vmul.f32 %v703, %v396
    %v727 = vmul.f32 %v705, %v397
    %v728 = vmul.f32 %v707, %v398
    %v729 = vmul.f32 %v709, %v399
    %v730 = vsel %vm436, %v723, 0.0
    %v731 = vsel %vm436, %v724, 0.0
    %v732 = vadd.f32 %v730, %v731
    %v733 = vsel %vm436, %v725, 0.0
    %v734 = vadd.f32 %v732, %v733
    %v735 = vsel %vm436, %v726, 0.0
    %v736 = vadd.f32 %v734, %v735
    %v737 = vsel %vm436, %v727, 0.0
    %v738 = vadd.f32 %v736, %v737
    %v739 = vsel %vm436, %v728, 0.0
    %v740 = vadd.f32 %v738, %v739
    %v741 = vsel %vm663, %v729, 0.0
    %v742 = vadd.f32 %v740, %v741
    %v743 = vrot.slane %v742, 4
    %v744 = vadd.f32 %v742, %v743
    %v745 = vrot.slane %v744, 2
    %v746 = vadd.f32 %v744, %v745
    %v747 = vrot.slane %v746, 1
    %v748 = vadd.f32 %v746, %v747
    %v749 = vrcp.pop %v722
    %v750 = vmul.f32 %v748, %v749
    %v751 = vlaneseq
    %v752 = vshrl.u32 %v751, 7
    %v753 = vsub.s32 1, %v752
    %v754 = vrot.slane %v607, %v753
    %v755 = vadd.f32 %v517, %v754
    %v756 = vadd.f32 %v520, %v754
    %v757 = vadd.f32 %v525, %v754
    %v758 = vadd.f32 %v528, %v754
    %v759 = vadd.f32 %v533, %v754
    %v760 = vadd.f32 %v536, %v754
    %v761 = vadd.f32 %v541, %v754
    %v762 = vtanh.pop %v755
    %v763 = vtanh.pop %v756
    %v764 = vtanh.pop %v757
    %v765 = vtanh.pop %v758
    %v766 = vtanh.pop %v759
    %v767 = vtanh.pop %v760
    %v768 = vtanh.pop %v761
    %v769 = vmul.f32 %v762, %v636
    %v770 = vmul.f32 %v763, %v636
    %v771 = vmul.f32 %v764, %v636
    %v772 = vmul.f32 %v765, %v636
    %v773 = vmul.f32 %v766, %v636
    %v774 = vmul.f32 %v767, %v636
    %v775 = vmul.f32 %v768, %v636
    %vm776 = vcmask 261121
    %v777 = vsel %vm776, %v769, 0.0
    %778 = vadd.xlane.f32.xlu0 %v777
    %v779 = vpop.xlane.xlu0 %778
    %v780 = vsel %vm436, %v770, 0.0
    %781 = vadd.xlane.f32.xlu0 %v780
    %v782 = vpop.xlane.xlu0 %781
    %v783 = vsel %vm436, %v771, 0.0
    %784 = vadd.xlane.f32.xlu0 %v783
    %v785 = vpop.xlane.xlu0 %784
    %v786 = vsel %vm436, %v772, 0.0
    %787 = vadd.xlane.f32.xlu0 %v786
    %v788 = vpop.xlane.xlu0 %787
    %v789 = vsel %vm436, %v773, 0.0
    %790 = vadd.xlane.f32.xlu0 %v789
    %v791 = vpop.xlane.xlu0 %790
    %v792 = vsel %vm436, %v774, 0.0
    %793 = vadd.xlane.f32.xlu0 %v792
    %v794 = vpop.xlane.xlu0 %793
    %vm795 = vcmask 254976
    %v796 = vsel %vm795, %v775, 0.0
    %797 = vadd.xlane.f32.xlu0 %v796
    %v798 = vpop.xlane.xlu0 %797
    %v799 = vadd.f32 %v779, %v667
    %v800 = vadd.f32 %v782, %v667
    %v801 = vadd.f32 %v785, %v667
    %v802 = vadd.f32 %v788, %v667
    %v803 = vadd.f32 %v791, %v667
    %v804 = vadd.f32 %v794, %v667
    %v805 = vadd.f32 %v798, %v667
    %vm806 = vcmask 1047553
    %v807 = vsel %vm806, %v799, -inf
    %v808 = vmax.f32 %v807, %v803
    %v809 = vmax.f32 %v800, %v804
    %vm810 = vcmask 1041408
    %v811 = vsel %vm810, %v805, -inf
    %v812 = vmax.f32 %v801, %v811
    %v813 = vmax.f32 %v808, %v809
    %v814 = vmax.f32 %v812, %v802
    %v815 = vmax.f32 %v813, %v814
    %v816 = vrot.slane %v815, 4
    %v817 = vmax.f32 %v815, %v816
    %v818 = vrot.slane %v817, 2
    %v819 = vmax.f32 %v817, %v818
    %v820 = vrot.slane %v819, 1
    %v821 = vmax.f32 %v819, %v820
    %v822 = vsub.f32 %v799, %v821
    %v823 = vsub.f32 %v800, %v821
    %v824 = vsub.f32 %v801, %v821
    %v825 = vsub.f32 %v802, %v821
    %v826 = vsub.f32 %v803, %v821
    %v827 = vsub.f32 %v804, %v821
    %v828 = vsub.f32 %v805, %v821
    %v829 = vmul.f32 %v822, 1.442695
    %v830 = vpow.pop %v829
    %v831 = vmul.f32 %v823, 1.442695
    %v832 = vpow.pop %v831
    %v833 = vmul.f32 %v824, 1.442695
    %v834 = vpow.pop %v833
    %v835 = vmul.f32 %v825, 1.442695
    %v836 = vpow.pop %v835
    %v837 = vmul.f32 %v826, 1.442695
    %v838 = vpow.pop %v837
    %v839 = vmul.f32 %v827, 1.442695
    %v840 = vpow.pop %v839
    %v841 = vmul.f32 %v828, 1.442695
    %v842 = vpow.pop %v841
    %vm850 = vcmask 1046528
    %v851 = vrot.slane %v830, 1
    %v852 = vrot.slane %v832, 1
    %v853 = vsel %vm850, %v851, %v852
    %v854 = vrot.slane %v834, 1
    %v855 = vsel %vm850, %v852, %v854
    %v856 = vrot.slane %v836, 1
    %v857 = vsel %vm850, %v854, %v856
    %v858 = vrot.slane %v838, 1
    %v859 = vsel %vm850, %v856, %v858
    %v860 = vrot.slane %v840, 1
    %v861 = vsel %vm850, %v858, %v860
    %v862 = vrot.slane %v842, 1
    %v863 = vsel %vm850, %v860, %v862
    %v871 = vadd.f32 %v853, %v855
    %v872 = vadd.f32 %v871, %v857
    %v873 = vadd.f32 %v872, %v859
    %v874 = vadd.f32 %v873, %v861
    %v875 = vadd.f32 %v874, %v863
    %v876 = vsel %vm677, %v862, 0.0
    %v877 = vadd.f32 %v875, %v876
    %v878 = vrot.slane %v877, 4
    %v879 = vadd.f32 %v877, %v878
    %v880 = vrot.slane %v879, 2
    %v881 = vadd.f32 %v879, %v880
    %v882 = vrot.slane %v881, 1
    %v883 = vadd.f32 %v881, %v882
    %v884 = vmul.f32 %v830, %v399
    %v885 = vmul.f32 %v832, %v400
    %v886 = vmul.f32 %v834, %v401
    %v887 = vmul.f32 %v836, %v402
    %v888 = vmul.f32 %v838, %v403
    %v889 = vmul.f32 %v840, %v404
    %v890 = vmul.f32 %v842, %v405
    %v898 = vrot.slane %v884, 1
    %v899 = vrot.slane %v885, 1
    %v900 = vsel %vm850, %v898, %v899
    %v901 = vrot.slane %v886, 1
    %v902 = vsel %vm850, %v899, %v901
    %v903 = vrot.slane %v887, 1
    %v904 = vsel %vm850, %v901, %v903
    %v905 = vrot.slane %v888, 1
    %v906 = vsel %vm850, %v903, %v905
    %v907 = vrot.slane %v889, 1
    %v908 = vsel %vm850, %v905, %v907
    %v909 = vrot.slane %v890, 1
    %v910 = vsel %vm850, %v907, %v909
    %v918 = vsel %vm436, %v900, 0.0
    %v919 = vsel %vm436, %v902, 0.0
    %v920 = vadd.f32 %v918, %v919
    %v921 = vsel %vm436, %v904, 0.0
    %v922 = vadd.f32 %v920, %v921
    %v923 = vsel %vm436, %v906, 0.0
    %v924 = vadd.f32 %v922, %v923
    %v925 = vsel %vm436, %v908, 0.0
    %v926 = vadd.f32 %v924, %v925
    %v927 = vsel %vm436, %v910, 0.0
    %v928 = vadd.f32 %v926, %v927
    %v929 = vsel %vm663, %v909, 0.0
    %v930 = vadd.f32 %v928, %v929
    %v931 = vrot.slane %v930, 4
    %v932 = vadd.f32 %v930, %v931
    %v933 = vrot.slane %v932, 2
    %v934 = vadd.f32 %v932, %v933
    %v935 = vrot.slane %v934, 1
    %v936 = vadd.f32 %v934, %v935
    %v937 = vrcp.pop %v883
    %v938 = vmul.f32 %v936, %v937
    %v939 = vsel %vm677, %v750, %v938
    %s940 = smul.u32 1, 1
    %s941 = sshll.u32 %s940, 4
    %942 = dma.done [#allocation3], %s941
    %s943 = sshll.u32 %s940, 4
    %944 = dma.done %s148, %s943
    %v945 = vld [vmem:[#allocation2] sm:$0x3]
    %v946 = vmax.f32 %v945, 0.0
    %v947 = vpack.c.bf16 %v946, %v946
    %v948 = vld [vmem:[%s13] sm:$0xff]
    %v949 = vld [vmem:[%s13 + $0x8] sm:$0xff]
    %v950 = vld [vmem:[%s13 + $0x10] sm:$0xff]
    %v951 = vld [vmem:[%s13 + $0x18] sm:$0xff]
    %v952 = vld [vmem:[%s14] sm:$0xff]
    %v953 = vld [vmem:[%s14 + $0x8] sm:$0xff]
    %v954 = vld [vmem:[%s14 + $0x10] sm:$0xff]
    %v955 = vld [vmem:[%s14 + $0x18] sm:$0xff]
    %v960 = vunpack.c.l.b16 %v952
    %v961 = vunpack.c.h.b16 %v952
    %v962 = vunpack.c.l.b16 %v953
    %v963 = vunpack.c.h.b16 %v953
    %v964 = vunpack.c.l.b16 %v954
    %v965 = vunpack.c.h.b16 %v954
    %v966 = vunpack.c.l.b16 %v955
    %v967 = vunpack.c.h.b16 %v955
    %v968 = vpack.c.b16 %v962, %v960
    %v969 = vpack.c.b16 %v963, %v961
    %v970 = vpack.c.b16 %v966, %v964
    %v971 = vpack.c.b16 %v967, %v965
    %976 = vmatprep.subr.bf16.mxu0 0
    %977 = vmatpush1.bf16.msra.mxu0 0
    %978 = vmatprep.subr.bf16.mxu0 0
    %979 = vmatpush1.bf16.msra.mxu0 0
    %980 = vmatprep.subr.bf16.mxu0 0
    %981 = vmatpush1.bf16.msra.mxu0 0
    %982 = vmatprep.subr.bf16.mxu0 0
    %983 = vmatpush1.bf16.msra.mxu0 0
    %984 = vmatprep.subr.bf16.mxu0 0
    %985 = vmatpush1.bf16.msra.mxu0 0
    %986 = vmatprep.subr.bf16.mxu0 0
    %987 = vmatpush1.bf16.msra.mxu0 0
    %988 = vmatprep.subr.bf16.mxu0 %v971
    %989 = vmatpush1.bf16.msra.mxu0 %v970
    %990 = vmatprep.subr.bf16.mxu0 %v969
    %991 = vmatpush1.bf16.msra.mxu0 %v968
    %992 = vmatprep.subr.bf16.mxu0 0
    %993 = vmatpush2.bf16.msra.mxu0 0
    %994 = vmatprep.subr.bf16.mxu0 0
    %995 = vmatpush2.bf16.msra.mxu0 0
    %996 = vmatprep.subr.bf16.mxu0 0
    %997 = vmatpush2.bf16.msra.mxu0 0
    %998 = vmatprep.subr.bf16.mxu0 0
    %999 = vmatpush2.bf16.msra.mxu0 0
    %1000 = vmatprep.subr.bf16.mxu0 0
    %1001 = vmatpush2.bf16.msra.mxu0 0
    %1002 = vmatprep.subr.bf16.mxu0 0
    %1003 = vmatpush2.bf16.msra.mxu0 0
    %1004 = vmatprep.subr.bf16.mxu0 0
    %1005 = vmatpush2.bf16.msra.mxu0 0
    %1006 = vmatprep.subr.bf16.mxu0 0
    %1007 = vmatpush2.bf16.msra.mxu0 0
    %1008 = vmatprep.mubr.bf16.mxu0 0
    %1009 = vmatmul.mubr.bf16.gmra.mxu0 %v570
    %v1010 = vpop.f32.mrf.mxu0
    %v1011 = vadd.f32 0.0, %v1010
    %v1012 = vpop.f32.mrf.mxu0
    %v1013 = vadd.f32 0.0, %v1012
    %v1014 = vpop.f32.mrf.mxu0
    %v1015 = vpop.f32.mrf.mxu0
    %1016 = vdwg.mxu0
    %v1021 = vunpack.c.l.b16 %v948
    %v1022 = vunpack.c.h.b16 %v948
    %v1023 = vunpack.c.l.b16 %v949
    %v1024 = vunpack.c.h.b16 %v949
    %v1025 = vunpack.c.l.b16 %v950
    %v1026 = vunpack.c.h.b16 %v950
    %v1027 = vunpack.c.l.b16 %v951
    %v1028 = vunpack.c.h.b16 %v951
    %v1029 = vpack.c.b16 %v1023, %v1021
    %v1030 = vpack.c.b16 %v1024, %v1022
    %v1031 = vpack.c.b16 %v1027, %v1025
    %v1032 = vpack.c.b16 %v1028, %v1026
    %v1038 = vsel %vm436, %v947, 0
    %1040 = vmatprep.subr.bf16.mxu0 0
    %1041 = vmatpush1.bf16.msra.mxu0 0
    %1042 = vmatprep.subr.bf16.mxu0 0
    %1043 = vmatpush1.bf16.msra.mxu0 0
    %1044 = vmatprep.subr.bf16.mxu0 0
    %1045 = vmatpush1.bf16.msra.mxu0 0
    %1046 = vmatprep.subr.bf16.mxu0 0
    %1047 = vmatpush1.bf16.msra.mxu0 0
    %1048 = vmatprep.subr.bf16.mxu0 0
    %1049 = vmatpush1.bf16.msra.mxu0 0
    %1050 = vmatprep.subr.bf16.mxu0 0
    %1051 = vmatpush1.bf16.msra.mxu0 0
    %1052 = vmatprep.subr.bf16.mxu0 %v1032
    %1053 = vmatpush1.bf16.msra.mxu0 %v1031
    %1054 = vmatprep.subr.bf16.mxu0 %v1030
    %1055 = vmatpush1.bf16.msra.mxu0 %v1029
    %1056 = vmatprep.subr.bf16.mxu0 0
    %1057 = vmatpush2.bf16.msra.mxu0 0
    %1058 = vmatprep.subr.bf16.mxu0 0
    %1059 = vmatpush2.bf16.msra.mxu0 0
    %1060 = vmatprep.subr.bf16.mxu0 0
    %1061 = vmatpush2.bf16.msra.mxu0 0
    %1062 = vmatprep.subr.bf16.mxu0 0
    %1063 = vmatpush2.bf16.msra.mxu0 0
    %1064 = vmatprep.subr.bf16.mxu0 0
    %1065 = vmatpush2.bf16.msra.mxu0 0
    %1066 = vmatprep.subr.bf16.mxu0 0
    %1067 = vmatpush2.bf16.msra.mxu0 0
    %1068 = vmatprep.subr.bf16.mxu0 0
    %1069 = vmatpush2.bf16.msra.mxu0 0
    %1070 = vmatprep.subr.bf16.mxu0 0
    %1071 = vmatpush2.bf16.msra.mxu0 0
    %1072 = vmatprep.mubr.bf16.mxu0 0
    %1073 = vmatmul.mubr.bf16.gmra.mxu0 %v1038
    %v1074 = vpop.f32.mrf.mxu0
    %v1075 = vadd.f32 %v1011, %v1074
    %v1076 = vpop.f32.mrf.mxu0
    %v1077 = vadd.f32 %v1013, %v1076
    %v1078 = vpop.f32.mrf.mxu0
    %v1079 = vpop.f32.mrf.mxu0
    %1080 = vdwg.mxu0
    %v1081 = vld [vmem:[%s16] sm:$0x3]
    %v1083 = vlaneseq
    %v1084 = vshrl.u32 %v1083, 7
    %v1085 = vsub.s32 0, %v1084
    %v1086 = vrot.slane %v1081, %v1085
    %v1087 = vlaneseq
    %v1088 = vshrl.u32 %v1087, 7
    %v1089 = vsub.s32 1, %v1088
    %v1090 = vrot.slane %v1081, %v1089
    %v1093 = vadd.f32 %v1075, %v1086
    %v1094 = vadd.f32 %v1077, %v1090
    %v1095 = vxor.u32 %v1093, 2147483648
    %v1096 = vmul.f32 %v1095, 1.442695
    %v1097 = vpow.pop %v1096
    %v1098 = vadd.f32 %v1097, 1.0
    %v1099 = vrcp.pop %v1098
    %v1100 = vmul.f32 1.0, %v1099
    %v1101 = vpack.c.bf16 %v939, %v939
    %v1102 = vld [vmem:[%s15] sm:$0xf]
    %v1103 = vld [vmem:[%s15 + $0x4] sm:$0xf]
    %v1104 = vld [vmem:[%s15 + $0x8] sm:$0xf]
    %v1105 = vld [vmem:[%s15 + $0xc] sm:$0xf]
    %v1110 = vunpack.c.l.b16 %v1102
    %v1111 = vunpack.c.l.b16 %v1103
    %v1112 = vunpack.c.l.b16 %v1104
    %v1113 = vunpack.c.l.b16 %v1105
    %v1114 = vpack.c.b16 %v1111, %v1110
    %v1115 = vpack.c.b16 %v1113, %v1112
    %v1119 = vsel %vm436, %v1101, 0
    %1121 = vmatprep.subr.bf16.mxu0 0
    %1122 = vmatpush1.bf16.msra.mxu0 0
    %1123 = vmatprep.subr.bf16.mxu0 0
    %1124 = vmatpush1.bf16.msra.mxu0 0
    %1125 = vmatprep.subr.bf16.mxu0 0
    %1126 = vmatpush1.bf16.msra.mxu0 0
    %1127 = vmatprep.subr.bf16.mxu0 0
    %1128 = vmatpush1.bf16.msra.mxu0 0
    %1129 = vmatprep.subr.bf16.mxu0 0
    %1130 = vmatpush1.bf16.msra.mxu0 0
    %1131 = vmatprep.subr.bf16.mxu0 0
    %1132 = vmatpush1.bf16.msra.mxu0 0
    %1133 = vmatprep.subr.bf16.mxu0 0
    %1134 = vmatpush1.bf16.msra.mxu0 %v1115
    %1135 = vmatprep.subr.bf16.mxu0 0
    %1136 = vmatpush1.bf16.msra.mxu0 %v1114
    %1137 = vmatprep.subr.bf16.mxu0 0
    %1138 = vmatpush2.bf16.msra.mxu0 0
    %1139 = vmatprep.subr.bf16.mxu0 0
    %1140 = vmatpush2.bf16.msra.mxu0 0
    %1141 = vmatprep.subr.bf16.mxu0 0
    %1142 = vmatpush2.bf16.msra.mxu0 0
    %1143 = vmatprep.subr.bf16.mxu0 0
    %1144 = vmatpush2.bf16.msra.mxu0 0
    %1145 = vmatprep.subr.bf16.mxu0 0
    %1146 = vmatpush2.bf16.msra.mxu0 0
    %1147 = vmatprep.subr.bf16.mxu0 0
    %1148 = vmatpush2.bf16.msra.mxu0 0
    %1149 = vmatprep.subr.bf16.mxu0 0
    %1150 = vmatpush2.bf16.msra.mxu0 0
    %1151 = vmatprep.subr.bf16.mxu0 0
    %1152 = vmatpush2.bf16.msra.mxu0 0
    %1153 = vmatprep.mubr.bf16.mxu0 0
    %1154 = vmatmul.mubr.bf16.gmra.mxu0 %v1119
    %v1155 = vpop.f32.mrf.mxu0
    %v1156 = vadd.f32 0.0, %v1155
    %v1157 = vpop.f32.mrf.mxu0
    %v1158 = vpop.f32.mrf.mxu0
    %v1159 = vpop.f32.mrf.mxu0
    %1160 = vdwg.mxu0
    %1162 = vrot.lane.b32.xlu0 %v1156, 96
    %v1163 = vpop.permute.xlu0 %1162
    %v1165 = vadd.f32 %v1093, %v1163
    %v1166 = vadd.f32 %v1094, %v1163
    %1168 = vrot.lane.b32.xlu0 %v1166, 96
    %v1169 = vpop.permute.xlu0 %1168
    %v1171 = vmax.f32 %v1165, %v1169
    %1173 = vrot.lane.b32.xlu0 %v196, 32
    %v1174 = vpop.permute.xlu0 %1173
    %v1176 = vmul.f32 %v1100, %v1174
    %1178 = vrot.lane.b32.xlu0 %v1171, 32
    %v1179 = vpop.permute.xlu0 %1178
    %v1181 = vmul.f32 %v1100, %v1179
    %1183 = vrot.lane.b32.xlu0 %v1181, 32
    %v1184 = vpop.permute.xlu0 %1183
    %v1186 = vadd.f32 %v1176, %v1184
    %v1187 = vtanh.pop %v1186
    %1189 = vrot.lane.b32.xlu0 %v1187, 32
    %v1190 = vpop.permute.xlu0 %1189
    %v1192 = vmul.f32 %v1100, %v1190
    %1194 = vrot.lane.b32.xlu0 %v1192, 64
    %v1195 = vpop.permute.xlu0 %1194
    %1197 = vst.msk [vmem:[#allocation12] sm:$0x3] %vm795, %v1195
    %1199 = vrot.lane.b32.xlu0 %v1186, 96
    %v1200 = vpop.permute.xlu0 %1199
    %1202 = vst.msk [vmem:[#allocation13] sm:$0x3] %vm795, %v1200
    // Predicated region
    $region138: #{_att2in2_step.1} parent=1 // pred_check
      _
    $region139: #{_att2in2_step.1} parent=1 // pred_check_branch
      %1204 = sbr.rel (0) target = $region141
    $region140: #{_att2in2_step.1} parent=1 // pred_region
      %s1206 = ssub.s32 32, 32
      %1207 = vsyncadd [#allocation7], %s1206
      %s1209 = sshll.u32 [#allocation12], 4
      %s1210 = int_to_ptr.vmem [resolvable:$true] %s1209
      %1212 = dma.vmem_to_hbm [thread:$0]  %s1210, 32, %s17, [#allocation7]
    $region141: #{_att2in2_step.1} parent=1 // pred_fallthru
      _
    // Predicated region
    $region142: #{_att2in2_step.1} parent=1 // pred_check
      _
    $region143: #{_att2in2_step.1} parent=1 // pred_check_branch
      %1214 = sbr.rel (0) target = $region145
    $region144: #{_att2in2_step.1} parent=1 // pred_region
      %s1216 = ssub.s32 32, 32
      %1217 = vsyncadd [#allocation14], %s1216
      %s1219 = sshll.u32 [#allocation13], 4
      %s1220 = int_to_ptr.vmem [resolvable:$true] %s1219
      %1222 = dma.vmem_to_hbm [thread:$0]  %s1220, 32, %s18, [#allocation14]
    $region145: #{_att2in2_step.1} parent=1 // pred_fallthru
      _
    // Predicated region
    $region146: #{_att2in2_step.1} parent=1 // pred_check
      _
    $region147: #{_att2in2_step.1} parent=1 // pred_check_branch
      %1224 = sbr.rel (0) target = $region149
    $region148: #{_att2in2_step.1} parent=1 // pred_region
      %1225 = dma.done [#allocation7], 32
    $region149: #{_att2in2_step.1} parent=1 // pred_fallthru
      _
    // Predicated region
    $region150: #{_att2in2_step.1} parent=1 // pred_check
      _
    $region151: #{_att2in2_step.1} parent=1 // pred_check_branch
      %1227 = sbr.rel (0) target = $region153
    $region152: #{_att2in2_step.1} parent=1 // pred_region
      %1228 = dma.done [#allocation14], 32
    $region153: #{_att2in2_step.1} parent=1 // pred_fallthru
      _
    %1229 = vsyncpa [#allocation6], 1
    %1230 = vsyncpa [#allocation11], 1
    %1231 = vsyncpa [#allocation7], 1
    %1232 = vsyncpa [#allocation14], 1
    %1233 = vsyncpa [#allocation8], 1
  %1234 = vsyncmov [#allocation3]
  %s1235 = vpop.sfrf %1234
  %p1236 = scmp.eq.s32.totalorder %s1235, 0
  %p1237 = pneg %p1236
  %1239 = shalt.err (%p1237)
  %s1240 = scalar_lea.sflag [#allocation3], 1
  %1241 = vsyncmov %s1240
  %s1242 = vpop.sfrf %1241
  %p1243 = scmp.eq.s32.totalorder %s1242, 0
  %p1244 = pneg %p1243
  %1246 = shalt.err (%p1244)

</llo_original>
